<compile_context>
chip_gen: v6e
topology: v6e:2x2x1
jax: 0.10.0
libtpu: 0.0.40
codegen_flags: <defaults>
</compile_context>

<pallas_src>
import functools

import jax
import jax.numpy as jnp
from jax import lax
from jax.experimental import pallas as pl
from jax.experimental.pallas import tpu as pltpu


def _round_up(x, m):
    return ((x + m - 1) // m) * m


def _pick_block_batch(n, cin, cout):
    """Images per grid block: smallest divisor of n whose blocks fill 8 sublanes."""
    for nb in range(1, n + 1):
        if n % nb:
            continue
        if nb == n:
            return nb
        if (nb * cin) % 8 == 0 and (nb * cout) % 8 == 0 and nb * cout >= 8:
            return nb
    # TODO(synk): cap nb against VMEM for very large batches with odd channels.
    return n


# ----------------------------------------------------------------------------
# Pass A: 3x3 conv + bias (+ residual) -> x1, plus centered per-row BN stats.
# ----------------------------------------------------------------------------
def resblock_conv_kernel(x_ref, w_ref, b_ref, x1_ref, stats_ref, xp_ref, *,
                         nb, cin, cout, w_dim, hw, pad, residual, use_mxu):
    """
    x_ref     : (nb*cin, hw)        flattened input images (row = b*cin + ci)
    w_ref     : (cout, 9*cin)       conv weights (layout depends on use_mxu)
    b_ref     : (cout, 1)           conv bias
    x1_ref    : (nb*cout, hw)       BN input (conv + bias [+ residual])
    stats_ref : (nb*cout, 2)        per-(image,channel) [mean, centered sumsq]
    xp_ref    : (nb*cin, hw+2*pad)  VMEM scratch: zero halo + image copy
    """
    rows = nb * cin
    wpad = hw + 2 * pad

    # Build the zero-haloed copy every step (scratch is per-core; do NOT rely
    # on a step-0 init under "parallel" grid semantics).
    zeros_halo = jnp.zeros((rows, pad), jnp.float32)
    xp_ref[:, 0:pad] = zeros_halo
    xp_ref[:, pad + hw:pad + hw + pad] = zeros_halo
    xp_ref[:, pad:pad + hw] = x_ref[...]
    xw = xp_ref[...]                                    # (rows, wpad)

    # Column-validity masks built in-kernel (broadcasted iota) and hoisted:
    # a source at flat column c feeds a dx=-1 tap only if c != w-1, and a
    # dx=+1 tap only if c != 0.  Halo sources are zero, so their mask value
    # is irrelevant.
    shift = _round_up(pad, w_dim) - pad                 # keep mod arg >= 0
    col = (lax.broadcasted_iota(jnp.int32, (1, wpad), 1) + shift) % w_dim
    xl = xw * (col != w_dim - 1).astype(jnp.float32)    # feeds dx = -1 taps
    xr = xw * (col != 0).astype(jnp.float32)            # feeds dx = +1 taps

    wv = w_ref[...]
    bias = b_ref[...]
    inv_hw = 1.0 / hw

    for b in range(nb):
        r0 = b * cin
        xw_b = xw[r0:r0 + cin, :]
        xl_b = xl[r0:r0 + cin, :]
        xr_b = xr[r0:r0 + cin, :]

        def tap(dy, dx):
            d = dy * w_dim + dx
            src = xl_b if dx == -1 else (xr_b if dx == 1 else xw_b)
            return src[:, pad + d:pad + d + hw]          # (cin, hw)

        if use_mxu:
            # One MXU dot against the stacked patch matrix.
            # Weight columns ordered as (ky*3+kx)*cin + ci to match the concat.
            patch = jnp.concatenate(
                [tap(dy, dx) for dy in (-1, 0, 1) for dx in (-1, 0, 1)], axis=0)
            x1 = jnp.dot(wv, patch, preferred_element_type=jnp.float32) + bias
        else:
            # Exact-f32 VPU broadcast-FMAs (toy channel counts); 3 independent
            # per-dy accumulators break the serial dependency chain.
            # Weight columns ordered as ci*9 + ky*3 + kx.
            accs = []
            for dy in (-1, 0, 1):
                acc = jnp.zeros((cout, hw), jnp.float32)
                for dx in (-1, 0, 1):
                    t = tap(dy, dx)
                    ky, kx = dy + 1, dx + 1
                    for ci in range(cin):
                        c = ci * 9 + ky * 3 + kx
                        acc = acc + wv[:, c:c + 1] * t[ci:ci + 1, :]
                accs.append(acc)
            x1 = accs[0] + accs[1] + accs[2] + bias

        if residual:                                     # residual after conv
            x1 = x1 + xw_b[:, pad:pad + hw]

        o0 = b * cout
        x1_ref[o0:o0 + cout, :] = x1
        mean_r = jnp.sum(x1, axis=1, keepdims=True) * inv_hw
        cen = x1 - mean_r
        stats_ref[o0:o0 + cout, 0:1] = mean_r
        stats_ref[o0:o0 + cout, 1:2] = jnp.sum(cen * cen, axis=1, keepdims=True)


# ----------------------------------------------------------------------------
# Pass B: elementwise BN (precomputed scale/shift) + residual + ReLU + residual.
# ----------------------------------------------------------------------------
def resblock_bn_kernel(x1_ref, p_ref, o_ref, *, residual):
    x1 = x1_ref[...]
    p = p_ref[...]                                       # (rows, 2) = [scale, shift]
    bn = x1 * p[:, 0:1] + p[:, 1:2]
    x2 = bn + x1 if residual else bn
    r = jnp.maximum(x2, 0.0)
    o_ref[...] = r + x2 if residual else r


# ----------------------------------------------------------------------------
# Wrapper: layout prep (free reshapes only), two pallas_calls, exact BN fold.
# ----------------------------------------------------------------------------
def resblock_forward(x, w, b, gamma, beta, *, eps=1e-5):
    n, cin, h, w_dim = x.shape
    cout = w.shape[0]
    residual = (cin == cout)
    hw = h * w_dim
    pad = _round_up(w_dim + 1, 128)          # lane-aligned halo >= W+1
    nb = _pick_block_batch(n, cin, cout)
    nblk = n // nb
    use_mxu = (cin % 8 == 0) and (cout % 8 == 0)

    x_flat = x.astype(jnp.float32).reshape(n * cin, hw)          # free reshape
    if use_mxu:
        w_op = jnp.transpose(w.astype(jnp.float32), (0, 2, 3, 1)).reshape(cout, 9 * cin)
    else:
        w_op = w.astype(jnp.float32).reshape(cout, cin * 9)
    b_col = b.astype(jnp.float32).reshape(cout, 1)

    cparams = pltpu.CompilerParams(
        dimension_semantics=("parallel",),
        vmem_limit_bytes=32 * 1024 * 1024,   # <= ~48 MiB so it also fits v7x
    )

    kern_a = functools.partial(
        resblock_conv_kernel, nb=nb, cin=cin, cout=cout, w_dim=w_dim, hw=hw,
        pad=pad, residual=residual, use_mxu=use_mxu)

    x1, stats = pl.pallas_call(
        kern_a,
        grid=(nblk,),
        in_specs=[
            pl.BlockSpec((nb * cin, hw), lambda i: (i, 0)),
            pl.BlockSpec((cout, 9 * cin), lambda i: (0, 0)),
            pl.BlockSpec((cout, 1), lambda i: (0, 0)),
        ],
        out_specs=[
            pl.BlockSpec((nb * cout, hw), lambda i: (i, 0)),
            pl.BlockSpec((nb * cout, 2), lambda i: (i, 0)),
        ],
        out_shape=[
            jax.ShapeDtypeStruct((n * cout, hw), jnp.float32),
            jax.ShapeDtypeStruct((n * cout, 2), jnp.float32),
        ],
        scratch_shapes=[pltpu.VMEM((nb * cin, hw + 2 * pad), jnp.float32)],
        compiler_params=cparams,
    )(x_flat, w_op, b_col)

    # Exact batch statistics: Chan combination of per-(image,channel) centered
    # stats (equal counts), numerically stable vs. E[x^2]-E[x]^2.
    st = stats.reshape(n, cout, 2)
    mean_b = st[:, :, 0]                                 # (n, cout)
    m2_b = st[:, :, 1]
    mean_c = jnp.mean(mean_b, axis=0)                    # (cout,)
    var_c = (jnp.sum(m2_b, axis=0)
             + hw * jnp.sum((mean_b - mean_c) ** 2, axis=0)) / (n * hw)
    scale = gamma.astype(jnp.float32) * lax.rsqrt(var_c + eps)
    shift = beta.astype(jnp.float32) - mean_c * scale
    p_big = jnp.tile(jnp.stack([scale, shift], axis=1), (n, 1))   # (n*cout, 2)

    out = pl.pallas_call(
        functools.partial(resblock_bn_kernel, residual=residual),
        grid=(nblk,),
        in_specs=[
            pl.BlockSpec((nb * cout, hw), lambda i: (i, 0)),
            pl.BlockSpec((nb * cout, 2), lambda i: (i, 0)),
        ],
        out_specs=pl.BlockSpec((nb * cout, hw), lambda i: (i, 0)),
        out_shape=jax.ShapeDtypeStruct((n * cout, hw), jnp.float32),
        compiler_params=cparams,
    )(x1, p_big)

    return out.reshape(n, cout, h, w_dim)


# ----------------------------------------------------------------------------
# Pure-JAX reference (mirrors the PyTorch forward exactly).
# ----------------------------------------------------------------------------
def resblock_reference(x, w, b, gamma, beta, *, eps=1e-5):
    cin = x.shape[1]
    cout = w.shape[0]
    residual = (cin == cout)
    conv = lax.conv_general_dilated(
        x, w, window_strides=(1, 1), padding=((1, 1), (1, 1)),
        dimension_numbers=("NCHW", "OIHW", "NCHW"),
        precision=lax.Precision.HIGHEST)
    x1 = conv + b[None, :, None, None]
    if residual:
        x1 = x1 + x
    mean = jnp.mean(x1, axis=(0, 2, 3), keepdims=True)
    var = jnp.mean((x1 - mean) ** 2, axis=(0, 2, 3), keepdims=True)
    bn = ((x1 - mean) * lax.rsqrt(var + eps) * gamma[None, :, None, None]
          + beta[None, :, None, None])
    x2 = bn + x1 if residual else bn
    r = jnp.maximum(x2, 0.0)
    return r + x2 if residual else r


if __name__ == "__main__":
    key = jax.random.PRNGKey(0)
    ks = jax.random.split(key, 9)
    N, C, H, W = 2, 4, 16, 16
    x = jax.random.normal(ks[0], (N, C, H, W), jnp.float32)

    # Residual case: in_ch == out_ch == 4.
    w_a = 0.3 * jax.random.normal(ks[1], (4, 4, 3, 3), jnp.float32)
    b_a = 0.1 * jax.random.normal(ks[2], (4,), jnp.float32)
    g_a = 1.0 + 0.1 * jax.random.normal(ks[3], (4,), jnp.float32)
    be_a = 0.1 * jax.random.normal(ks[4], (4,), jnp.float32)

    # Channel-changing case: in_ch=4 -> out_ch=1 (no residual adds).
    w_b = 0.3 * jax.random.normal(ks[5], (1, 4, 3, 3), jnp.float32)
    b_b = 0.1 * jax.random.normal(ks[6], (1,), jnp.float32)
    g_b = 1.0 + 0.1 * jax.random.normal(ks[7], (1,), jnp.float32)
    be_b = 0.1 * jax.random.normal(ks[8], (1,), jnp.float32)

    fwd = jax.jit(resblock_forward)
    y_a = fwd(x, w_a, b_a, g_a, be_a)
    y_b = fwd(y_a, w_b, b_b, g_b, be_b)
    jax.block_until_ready(y_a)
    jax.block_until_ready(y_b)

    assert y_a.shape == (N, 4, H, W)
    assert y_b.shape == (N, 1, H, W)

    ref_a = resblock_reference(x, w_a, b_a, g_a, be_a)
    ref_b = resblock_reference(ref_a, w_b, b_b, g_b, be_b)
    assert jnp.allclose(y_a, ref_a, atol=1e-3, rtol=1e-3)
    assert jnp.allclose(y_b, ref_b, atol=1e-3, rtol=1e-3)

    print("KERNEL_OK")
</pallas_src>

<mosaic_0001>
module attributes {stable_mosaic.version = 11 : i64} {
  func.func @resblock_conv_kernel(%arg0: i32, %arg1: memref<8x256xf32, #tpu.memory_space<vmem>>, %arg2: memref<4x36xf32, #tpu.memory_space<vmem>>, %arg3: memref<4x1xf32, #tpu.memory_space<vmem>>, %arg4: memref<8x256xf32, #tpu.memory_space<vmem>>, %arg5: memref<8x2xf32, #tpu.memory_space<vmem>>, %arg6: memref<8x512xf32, #tpu.memory_space<vmem>>) attributes {dimension_semantics = [#tpu.dimension_semantics<parallel>], iteration_bounds = array<i64: 1>, scalar_prefetch = 0 : i64, scratch_operands = 1 : i64, tpu.core_type = #tpu.core_type<tc>, window_params = [{transform_indices = @transform_0, window_bounds = array<i64: 8, 256>}, {pipeline_mode = #tpu.pipeline_mode<synchronous>, transform_indices = @transform_1, window_bounds = array<i64: 4, 36>}, {pipeline_mode = #tpu.pipeline_mode<synchronous>, transform_indices = @transform_2, window_bounds = array<i64: 4, 1>}, {transform_indices = @transform_3, window_bounds = array<i64: 8, 256>}, {transform_indices = @transform_4, window_bounds = array<i64: 8, 2>}]} {
    %cst = arith.constant 0.000000e+00 : f32
    %0 = vector.broadcast %cst : f32 to vector<8x128xf32>
    %c0 = arith.constant 0 : index
    %c0_0 = arith.constant 0 : index
    %1 = vector.load %arg6[%c0, %c0_0] : memref<8x512xf32, #tpu.memory_space<vmem>>, vector<8x128xf32>
    tpu.vector_store %arg6[%c0, %c0_0], %0 {strides = array<i32>} : memref<8x512xf32, #tpu.memory_space<vmem>>, vector<8x128xf32>,
    %c0_1 = arith.constant 0 : index
    %c384 = arith.constant 384 : index
    %2 = vector.load %arg6[%c0_1, %c384] : memref<8x512xf32, #tpu.memory_space<vmem>>, vector<8x128xf32>
    tpu.vector_store %arg6[%c0_1, %c384], %0 {strides = array<i32>} : memref<8x512xf32, #tpu.memory_space<vmem>>, vector<8x128xf32>,
    %c0_2 = arith.constant 0 : index
    %c0_3 = arith.constant 0 : index
    %3 = vector.load %arg1[%c0_2, %c0_3] : memref<8x256xf32, #tpu.memory_space<vmem>>, vector<8x256xf32>
    %c0_4 = arith.constant 0 : index
    %c128 = arith.constant 128 : index
    %4 = vector.load %arg6[%c0_4, %c128] : memref<8x512xf32, #tpu.memory_space<vmem>>, vector<8x256xf32>
    tpu.vector_store %arg6[%c0_4, %c128], %3 {strides = array<i32>} : memref<8x512xf32, #tpu.memory_space<vmem>>, vector<8x256xf32>,
    %c0_5 = arith.constant 0 : index
    %c0_6 = arith.constant 0 : index
    %5 = vector.load %arg6[%c0_5, %c0_6] : memref<8x512xf32, #tpu.memory_space<vmem>>, vector<8x512xf32>
    %6 = tpu.iota {dimensions = array<i32: 1>} : vector<1x512xi32>
    %c0_i32 = arith.constant 0 : i32
    %7 = vector.broadcast %c0_i32 : i32 to vector<1x512xi32>
    %8 = arith.addi %6, %7 : vector<1x512xi32>
    %c16_i32 = arith.constant 16 : i32
    %c0_i32_7 = arith.constant 0 : i32
    %9 = arith.cmpi eq, %c16_i32, %c0_i32_7 : i32
    %c1_i32 = arith.constant 1 : i32
    %10 = arith.select %9, %c1_i32, %c16_i32 : i32
    %11 = vector.broadcast %10 : i32 to vector<1x512xi32>
    %12 = arith.remsi %8, %11 : vector<1x512xi32>
    %c0_i32_8 = arith.constant 0 : i32
    %13 = vector.broadcast %c0_i32_8 : i32 to vector<1x512xi32>
    %14 = arith.cmpi ne, %12, %13 : vector<1x512xi32>
    %c0_i32_9 = arith.constant 0 : i32
    %15 = vector.broadcast %c0_i32_9 : i32 to vector<1x512xi32>
    %16 = arith.cmpi slt, %12, %15 : vector<1x512xi32>
    %c0_i32_10 = arith.constant 0 : i32
    %17 = arith.cmpi slt, %10, %c0_i32_10 : i32
    %18 = vector.broadcast %17 : i1 to vector<1x512xi1>
    %19 = vector.broadcast %18 : vector<1x512xi1> to vector<1x512xi1>
    %20 = arith.xori %16, %19 : vector<1x512xi1>
    %21 = arith.andi %20, %14 : vector<1x512xi1>
    %22 = vector.broadcast %10 : i32 to vector<1x512xi32>
    %23 = arith.addi %12, %22 : vector<1x512xi32>
    %24 = arith.select %21, %23, %12 : vector<1x512xi1>, vector<1x512xi32>
    %c15_i32 = arith.constant 15 : i32
    %25 = vector.broadcast %c15_i32 : i32 to vector<1x512xi32>
    %26 = arith.cmpi ne, %24, %25 : vector<1x512xi32>
    %27 = arith.extui %26 : vector<1x512xi1> to vector<1x512xi32>
    %28 = arith.sitofp %27 : vector<1x512xi32> to vector<1x512xf32>
    %29 = vector.broadcast %28 : vector<1x512xf32> to vector<8x512xf32>
    %30 = arith.mulf %5, %29 : vector<8x512xf32>
    %c0_i32_11 = arith.constant 0 : i32
    %31 = vector.broadcast %c0_i32_11 : i32 to vector<1x512xi32>
    %32 = arith.cmpi ne, %24, %31 : vector<1x512xi32>
    %33 = arith.extui %32 : vector<1x512xi1> to vector<1x512xi32>
    %34 = arith.sitofp %33 : vector<1x512xi32> to vector<1x512xf32>
    %35 = vector.broadcast %34 : vector<1x512xf32> to vector<8x512xf32>
    %36 = arith.mulf %5, %35 : vector<8x512xf32>
    %c0_12 = arith.constant 0 : index
    %c0_13 = arith.constant 0 : index
    %37 = vector.load %arg2[%c0_12, %c0_13] : memref<4x36xf32, #tpu.memory_space<vmem>>, vector<4x36xf32>
    %c0_14 = arith.constant 0 : index
    %c0_15 = arith.constant 0 : index
    %38 = vector.load %arg3[%c0_14, %c0_15] : memref<4x1xf32, #tpu.memory_space<vmem>>, vector<4x1xf32>
    %39 = vector.extract_strided_slice %5 {offsets = [0, 0], sizes = [4, 512], strides = [1, 1]} : vector<8x512xf32> to vector<4x512xf32>
    %40 = vector.extract_strided_slice %30 {offsets = [0, 0], sizes = [4, 512], strides = [1, 1]} : vector<8x512xf32> to vector<4x512xf32>
    %41 = vector.extract_strided_slice %36 {offsets = [0, 0], sizes = [4, 512], strides = [1, 1]} : vector<8x512xf32> to vector<4x512xf32>
    %cst_16 = arith.constant 0.000000e+00 : f32
    %42 = vector.broadcast %cst_16 : f32 to vector<4x256xf32>
    %43 = vector.extract_strided_slice %40 {offsets = [0, 111], sizes = [4, 256], strides = [1, 1]} : vector<4x512xf32> to vector<4x256xf32>
    %44 = vector.extract_strided_slice %37 {offsets = [0, 0], sizes = [4, 1], strides = [1, 1]} : vector<4x36xf32> to vector<4x1xf32>
    %45 = vector.extract_strided_slice %43 {offsets = [0, 0], sizes = [1, 256], strides = [1, 1]} : vector<4x256xf32> to vector<1x256xf32>
    %46 = vector.broadcast %44 : vector<4x1xf32> to vector<4x256xf32>
    %47 = vector.broadcast %45 : vector<1x256xf32> to vector<4x256xf32>
    %48 = arith.mulf %46, %47 : vector<4x256xf32>
    %49 = arith.addf %42, %48 : vector<4x256xf32>
    %50 = vector.extract_strided_slice %37 {offsets = [0, 9], sizes = [4, 1], strides = [1, 1]} : vector<4x36xf32> to vector<4x1xf32>
    %51 = vector.extract_strided_slice %43 {offsets = [1, 0], sizes = [1, 256], strides = [1, 1]} : vector<4x256xf32> to vector<1x256xf32>
    %52 = vector.broadcast %50 : vector<4x1xf32> to vector<4x256xf32>
    %53 = vector.broadcast %51 : vector<1x256xf32> to vector<4x256xf32>
    %54 = arith.mulf %52, %53 : vector<4x256xf32>
    %55 = arith.addf %49, %54 : vector<4x256xf32>
    %56 = vector.extract_strided_slice %37 {offsets = [0, 18], sizes = [4, 1], strides = [1, 1]} : vector<4x36xf32> to vector<4x1xf32>
    %57 = vector.extract_strided_slice %43 {offsets = [2, 0], sizes = [1, 256], strides = [1, 1]} : vector<4x256xf32> to vector<1x256xf32>
    %58 = vector.broadcast %56 : vector<4x1xf32> to vector<4x256xf32>
    %59 = vector.broadcast %57 : vector<1x256xf32> to vector<4x256xf32>
    %60 = arith.mulf %58, %59 : vector<4x256xf32>
    %61 = arith.addf %55, %60 : vector<4x256xf32>
    %62 = vector.extract_strided_slice %37 {offsets = [0, 27], sizes = [4, 1], strides = [1, 1]} : vector<4x36xf32> to vector<4x1xf32>
    %63 = vector.extract_strided_slice %43 {offsets = [3, 0], sizes = [1, 256], strides = [1, 1]} : vector<4x256xf32> to vector<1x256xf32>
    %64 = vector.broadcast %62 : vector<4x1xf32> to vector<4x256xf32>
    %65 = vector.broadcast %63 : vector<1x256xf32> to vector<4x256xf32>
    %66 = arith.mulf %64, %65 : vector<4x256xf32>
    %67 = arith.addf %61, %66 : vector<4x256xf32>
    %68 = vector.extract_strided_slice %39 {offsets = [0, 112], sizes = [4, 256], strides = [1, 1]} : vector<4x512xf32> to vector<4x256xf32>
    %69 = vector.extract_strided_slice %37 {offsets = [0, 1], sizes = [4, 1], strides = [1, 1]} : vector<4x36xf32> to vector<4x1xf32>
    %70 = vector.extract_strided_slice %68 {offsets = [0, 0], sizes = [1, 256], strides = [1, 1]} : vector<4x256xf32> to vector<1x256xf32>
    %71 = vector.broadcast %69 : vector<4x1xf32> to vector<4x256xf32>
    %72 = vector.broadcast %70 : vector<1x256xf32> to vector<4x256xf32>
    %73 = arith.mulf %71, %72 : vector<4x256xf32>
    %74 = arith.addf %67, %73 : vector<4x256xf32>
    %75 = vector.extract_strided_slice %37 {offsets = [0, 10], sizes = [4, 1], strides = [1, 1]} : vector<4x36xf32> to vector<4x1xf32>
    %76 = vector.extract_strided_slice %68 {offsets = [1, 0], sizes = [1, 256], strides = [1, 1]} : vector<4x256xf32> to vector<1x256xf32>
    %77 = vector.broadcast %75 : vector<4x1xf32> to vector<4x256xf32>
    %78 = vector.broadcast %76 : vector<1x256xf32> to vector<4x256xf32>
    %79 = arith.mulf %77, %78 : vector<4x256xf32>
    %80 = arith.addf %74, %79 : vector<4x256xf32>
    %81 = vector.extract_strided_slice %37 {offsets = [0, 19], sizes = [4, 1], strides = [1, 1]} : vector<4x36xf32> to vector<4x1xf32>
    %82 = vector.extract_strided_slice %68 {offsets = [2, 0], sizes = [1, 256], strides = [1, 1]} : vector<4x256xf32> to vector<1x256xf32>
    %83 = vector.broadcast %81 : vector<4x1xf32> to vector<4x256xf32>
    %84 = vector.broadcast %82 : vector<1x256xf32> to vector<4x256xf32>
    %85 = arith.mulf %83, %84 : vector<4x256xf32>
    %86 = arith.addf %80, %85 : vector<4x256xf32>
    %87 = vector.extract_strided_slice %37 {offsets = [0, 28], sizes = [4, 1], strides = [1, 1]} : vector<4x36xf32> to vector<4x1xf32>
    %88 = vector.extract_strided_slice %68 {offsets = [3, 0], sizes = [1, 256], strides = [1, 1]} : vector<4x256xf32> to vector<1x256xf32>
    %89 = vector.broadcast %87 : vector<4x1xf32> to vector<4x256xf32>
    %90 = vector.broadcast %88 : vector<1x256xf32> to vector<4x256xf32>
    %91 = arith.mulf %89, %90 : vector<4x256xf32>
    %92 = arith.addf %86, %91 : vector<4x256xf32>
    %93 = vector.extract_strided_slice %41 {offsets = [0, 113], sizes = [4, 256], strides = [1, 1]} : vector<4x512xf32> to vector<4x256xf32>
    %94 = vector.extract_strided_slice %37 {offsets = [0, 2], sizes = [4, 1], strides = [1, 1]} : vector<4x36xf32> to vector<4x1xf32>
    %95 = vector.extract_strided_slice %93 {offsets = [0, 0], sizes = [1, 256], strides = [1, 1]} : vector<4x256xf32> to vector<1x256xf32>
    %96 = vector.broadcast %94 : vector<4x1xf32> to vector<4x256xf32>
    %97 = vector.broadcast %95 : vector<1x256xf32> to vector<4x256xf32>
    %98 = arith.mulf %96, %97 : vector<4x256xf32>
    %99 = arith.addf %92, %98 : vector<4x256xf32>
    %100 = vector.extract_strided_slice %37 {offsets = [0, 11], sizes = [4, 1], strides = [1, 1]} : vector<4x36xf32> to vector<4x1xf32>
    %101 = vector.extract_strided_slice %93 {offsets = [1, 0], sizes = [1, 256], strides = [1, 1]} : vector<4x256xf32> to vector<1x256xf32>
    %102 = vector.broadcast %100 : vector<4x1xf32> to vector<4x256xf32>
    %103 = vector.broadcast %101 : vector<1x256xf32> to vector<4x256xf32>
    %104 = arith.mulf %102, %103 : vector<4x256xf32>
    %105 = arith.addf %99, %104 : vector<4x256xf32>
    %106 = vector.extract_strided_slice %37 {offsets = [0, 20], sizes = [4, 1], strides = [1, 1]} : vector<4x36xf32> to vector<4x1xf32>
    %107 = vector.extract_strided_slice %93 {offsets = [2, 0], sizes = [1, 256], strides = [1, 1]} : vector<4x256xf32> to vector<1x256xf32>
    %108 = vector.broadcast %106 : vector<4x1xf32> to vector<4x256xf32>
    %109 = vector.broadcast %107 : vector<1x256xf32> to vector<4x256xf32>
    %110 = arith.mulf %108, %109 : vector<4x256xf32>
    %111 = arith.addf %105, %110 : vector<4x256xf32>
    %112 = vector.extract_strided_slice %37 {offsets = [0, 29], sizes = [4, 1], strides = [1, 1]} : vector<4x36xf32> to vector<4x1xf32>
    %113 = vector.extract_strided_slice %93 {offsets = [3, 0], sizes = [1, 256], strides = [1, 1]} : vector<4x256xf32> to vector<1x256xf32>
    %114 = vector.broadcast %112 : vector<4x1xf32> to vector<4x256xf32>
    %115 = vector.broadcast %113 : vector<1x256xf32> to vector<4x256xf32>
    %116 = arith.mulf %114, %115 : vector<4x256xf32>
    %117 = arith.addf %111, %116 : vector<4x256xf32>
    %cst_17 = arith.constant 0.000000e+00 : f32
    %118 = vector.broadcast %cst_17 : f32 to vector<4x256xf32>
    %119 = vector.extract_strided_slice %40 {offsets = [0, 127], sizes = [4, 256], strides = [1, 1]} : vector<4x512xf32> to vector<4x256xf32>
    %120 = vector.extract_strided_slice %37 {offsets = [0, 3], sizes = [4, 1], strides = [1, 1]} : vector<4x36xf32> to vector<4x1xf32>
    %121 = vector.extract_strided_slice %119 {offsets = [0, 0], sizes = [1, 256], strides = [1, 1]} : vector<4x256xf32> to vector<1x256xf32>
    %122 = vector.broadcast %120 : vector<4x1xf32> to vector<4x256xf32>
    %123 = vector.broadcast %121 : vector<1x256xf32> to vector<4x256xf32>
    %124 = arith.mulf %122, %123 : vector<4x256xf32>
    %125 = arith.addf %118, %124 : vector<4x256xf32>
    %126 = vector.extract_strided_slice %37 {offsets = [0, 12], sizes = [4, 1], strides = [1, 1]} : vector<4x36xf32> to vector<4x1xf32>
    %127 = vector.extract_strided_slice %119 {offsets = [1, 0], sizes = [1, 256], strides = [1, 1]} : vector<4x256xf32> to vector<1x256xf32>
    %128 = vector.broadcast %126 : vector<4x1xf32> to vector<4x256xf32>
    %129 = vector.broadcast %127 : vector<1x256xf32> to vector<4x256xf32>
    %130 = arith.mulf %128, %129 : vector<4x256xf32>
    %131 = arith.addf %125, %130 : vector<4x256xf32>
    %132 = vector.extract_strided_slice %37 {offsets = [0, 21], sizes = [4, 1], strides = [1, 1]} : vector<4x36xf32> to vector<4x1xf32>
    %133 = vector.extract_strided_slice %119 {offsets = [2, 0], sizes = [1, 256], strides = [1, 1]} : vector<4x256xf32> to vector<1x256xf32>
    %134 = vector.broadcast %132 : vector<4x1xf32> to vector<4x256xf32>
    %135 = vector.broadcast %133 : vector<1x256xf32> to vector<4x256xf32>
    %136 = arith.mulf %134, %135 : vector<4x256xf32>
    %137 = arith.addf %131, %136 : vector<4x256xf32>
    %138 = vector.extract_strided_slice %37 {offsets = [0, 30], sizes = [4, 1], strides = [1, 1]} : vector<4x36xf32> to vector<4x1xf32>
    %139 = vector.extract_strided_slice %119 {offsets = [3, 0], sizes = [1, 256], strides = [1, 1]} : vector<4x256xf32> to vector<1x256xf32>
    %140 = vector.broadcast %138 : vector<4x1xf32> to vector<4x256xf32>
    %141 = vector.broadcast %139 : vector<1x256xf32> to vector<4x256xf32>
    %142 = arith.mulf %140, %141 : vector<4x256xf32>
    %143 = arith.addf %137, %142 : vector<4x256xf32>
    %144 = vector.extract_strided_slice %39 {offsets = [0, 128], sizes = [4, 256], strides = [1, 1]} : vector<4x512xf32> to vector<4x256xf32>
    %145 = vector.extract_strided_slice %37 {offsets = [0, 4], sizes = [4, 1], strides = [1, 1]} : vector<4x36xf32> to vector<4x1xf32>
    %146 = vector.extract_strided_slice %144 {offsets = [0, 0], sizes = [1, 256], strides = [1, 1]} : vector<4x256xf32> to vector<1x256xf32>
    %147 = vector.broadcast %145 : vector<4x1xf32> to vector<4x256xf32>
    %148 = vector.broadcast %146 : vector<1x256xf32> to vector<4x256xf32>
    %149 = arith.mulf %147, %148 : vector<4x256xf32>
    %150 = arith.addf %143, %149 : vector<4x256xf32>
    %151 = vector.extract_strided_slice %37 {offsets = [0, 13], sizes = [4, 1], strides = [1, 1]} : vector<4x36xf32> to vector<4x1xf32>
    %152 = vector.extract_strided_slice %144 {offsets = [1, 0], sizes = [1, 256], strides = [1, 1]} : vector<4x256xf32> to vector<1x256xf32>
    %153 = vector.broadcast %151 : vector<4x1xf32> to vector<4x256xf32>
    %154 = vector.broadcast %152 : vector<1x256xf32> to vector<4x256xf32>
    %155 = arith.mulf %153, %154 : vector<4x256xf32>
    %156 = arith.addf %150, %155 : vector<4x256xf32>
    %157 = vector.extract_strided_slice %37 {offsets = [0, 22], sizes = [4, 1], strides = [1, 1]} : vector<4x36xf32> to vector<4x1xf32>
    %158 = vector.extract_strided_slice %144 {offsets = [2, 0], sizes = [1, 256], strides = [1, 1]} : vector<4x256xf32> to vector<1x256xf32>
    %159 = vector.broadcast %157 : vector<4x1xf32> to vector<4x256xf32>
    %160 = vector.broadcast %158 : vector<1x256xf32> to vector<4x256xf32>
    %161 = arith.mulf %159, %160 : vector<4x256xf32>
    %162 = arith.addf %156, %161 : vector<4x256xf32>
    %163 = vector.extract_strided_slice %37 {offsets = [0, 31], sizes = [4, 1], strides = [1, 1]} : vector<4x36xf32> to vector<4x1xf32>
    %164 = vector.extract_strided_slice %144 {offsets = [3, 0], sizes = [1, 256], strides = [1, 1]} : vector<4x256xf32> to vector<1x256xf32>
    %165 = vector.broadcast %163 : vector<4x1xf32> to vector<4x256xf32>
    %166 = vector.broadcast %164 : vector<1x256xf32> to vector<4x256xf32>
    %167 = arith.mulf %165, %166 : vector<4x256xf32>
    %168 = arith.addf %162, %167 : vector<4x256xf32>
    %169 = vector.extract_strided_slice %41 {offsets = [0, 129], sizes = [4, 256], strides = [1, 1]} : vector<4x512xf32> to vector<4x256xf32>
    %170 = vector.extract_strided_slice %37 {offsets = [0, 5], sizes = [4, 1], strides = [1, 1]} : vector<4x36xf32> to vector<4x1xf32>
    %171 = vector.extract_strided_slice %169 {offsets = [0, 0], sizes = [1, 256], strides = [1, 1]} : vector<4x256xf32> to vector<1x256xf32>
    %172 = vector.broadcast %170 : vector<4x1xf32> to vector<4x256xf32>
    %173 = vector.broadcast %171 : vector<1x256xf32> to vector<4x256xf32>
    %174 = arith.mulf %172, %173 : vector<4x256xf32>
    %175 = arith.addf %168, %174 : vector<4x256xf32>
    %176 = vector.extract_strided_slice %37 {offsets = [0, 14], sizes = [4, 1], strides = [1, 1]} : vector<4x36xf32> to vector<4x1xf32>
    %177 = vector.extract_strided_slice %169 {offsets = [1, 0], sizes = [1, 256], strides = [1, 1]} : vector<4x256xf32> to vector<1x256xf32>
    %178 = vector.broadcast %176 : vector<4x1xf32> to vector<4x256xf32>
    %179 = vector.broadcast %177 : vector<1x256xf32> to vector<4x256xf32>
    %180 = arith.mulf %178, %179 : vector<4x256xf32>
    %181 = arith.addf %175, %180 : vector<4x256xf32>
    %182 = vector.extract_strided_slice %37 {offsets = [0, 23], sizes = [4, 1], strides = [1, 1]} : vector<4x36xf32> to vector<4x1xf32>
    %183 = vector.extract_strided_slice %169 {offsets = [2, 0], sizes = [1, 256], strides = [1, 1]} : vector<4x256xf32> to vector<1x256xf32>
    %184 = vector.broadcast %182 : vector<4x1xf32> to vector<4x256xf32>
    %185 = vector.broadcast %183 : vector<1x256xf32> to vector<4x256xf32>
    %186 = arith.mulf %184, %185 : vector<4x256xf32>
    %187 = arith.addf %181, %186 : vector<4x256xf32>
    %188 = vector.extract_strided_slice %37 {offsets = [0, 32], sizes = [4, 1], strides = [1, 1]} : vector<4x36xf32> to vector<4x1xf32>
    %189 = vector.extract_strided_slice %169 {offsets = [3, 0], sizes = [1, 256], strides = [1, 1]} : vector<4x256xf32> to vector<1x256xf32>
    %190 = vector.broadcast %188 : vector<4x1xf32> to vector<4x256xf32>
    %191 = vector.broadcast %189 : vector<1x256xf32> to vector<4x256xf32>
    %192 = arith.mulf %190, %191 : vector<4x256xf32>
    %193 = arith.addf %187, %192 : vector<4x256xf32>
    %cst_18 = arith.constant 0.000000e+00 : f32
    %194 = vector.broadcast %cst_18 : f32 to vector<4x256xf32>
    %195 = vector.extract_strided_slice %40 {offsets = [0, 143], sizes = [4, 256], strides = [1, 1]} : vector<4x512xf32> to vector<4x256xf32>
    %196 = vector.extract_strided_slice %37 {offsets = [0, 6], sizes = [4, 1], strides = [1, 1]} : vector<4x36xf32> to vector<4x1xf32>
    %197 = vector.extract_strided_slice %195 {offsets = [0, 0], sizes = [1, 256], strides = [1, 1]} : vector<4x256xf32> to vector<1x256xf32>
    %198 = vector.broadcast %196 : vector<4x1xf32> to vector<4x256xf32>
    %199 = vector.broadcast %197 : vector<1x256xf32> to vector<4x256xf32>
    %200 = arith.mulf %198, %199 : vector<4x256xf32>
    %201 = arith.addf %194, %200 : vector<4x256xf32>
    %202 = vector.extract_strided_slice %37 {offsets = [0, 15], sizes = [4, 1], strides = [1, 1]} : vector<4x36xf32> to vector<4x1xf32>
    %203 = vector.extract_strided_slice %195 {offsets = [1, 0], sizes = [1, 256], strides = [1, 1]} : vector<4x256xf32> to vector<1x256xf32>
    %204 = vector.broadcast %202 : vector<4x1xf32> to vector<4x256xf32>
    %205 = vector.broadcast %203 : vector<1x256xf32> to vector<4x256xf32>
    %206 = arith.mulf %204, %205 : vector<4x256xf32>
    %207 = arith.addf %201, %206 : vector<4x256xf32>
    %208 = vector.extract_strided_slice %37 {offsets = [0, 24], sizes = [4, 1], strides = [1, 1]} : vector<4x36xf32> to vector<4x1xf32>
    %209 = vector.extract_strided_slice %195 {offsets = [2, 0], sizes = [1, 256], strides = [1, 1]} : vector<4x256xf32> to vector<1x256xf32>
    %210 = vector.broadcast %208 : vector<4x1xf32> to vector<4x256xf32>
    %211 = vector.broadcast %209 : vector<1x256xf32> to vector<4x256xf32>
    %212 = arith.mulf %210, %211 : vector<4x256xf32>
    %213 = arith.addf %207, %212 : vector<4x256xf32>
    %214 = vector.extract_strided_slice %37 {offsets = [0, 33], sizes = [4, 1], strides = [1, 1]} : vector<4x36xf32> to vector<4x1xf32>
    %215 = vector.extract_strided_slice %195 {offsets = [3, 0], sizes = [1, 256], strides = [1, 1]} : vector<4x256xf32> to vector<1x256xf32>
    %216 = vector.broadcast %214 : vector<4x1xf32> to vector<4x256xf32>
    %217 = vector.broadcast %215 : vector<1x256xf32> to vector<4x256xf32>
    %218 = arith.mulf %216, %217 : vector<4x256xf32>
    %219 = arith.addf %213, %218 : vector<4x256xf32>
    %220 = vector.extract_strided_slice %39 {offsets = [0, 144], sizes = [4, 256], strides = [1, 1]} : vector<4x512xf32> to vector<4x256xf32>
    %221 = vector.extract_strided_slice %37 {offsets = [0, 7], sizes = [4, 1], strides = [1, 1]} : vector<4x36xf32> to vector<4x1xf32>
    %222 = vector.extract_strided_slice %220 {offsets = [0, 0], sizes = [1, 256], strides = [1, 1]} : vector<4x256xf32> to vector<1x256xf32>
    %223 = vector.broadcast %221 : vector<4x1xf32> to vector<4x256xf32>
    %224 = vector.broadcast %222 : vector<1x256xf32> to vector<4x256xf32>
    %225 = arith.mulf %223, %224 : vector<4x256xf32>
    %226 = arith.addf %219, %225 : vector<4x256xf32>
    %227 = vector.extract_strided_slice %37 {offsets = [0, 16], sizes = [4, 1], strides = [1, 1]} : vector<4x36xf32> to vector<4x1xf32>
    %228 = vector.extract_strided_slice %220 {offsets = [1, 0], sizes = [1, 256], strides = [1, 1]} : vector<4x256xf32> to vector<1x256xf32>
    %229 = vector.broadcast %227 : vector<4x1xf32> to vector<4x256xf32>
    %230 = vector.broadcast %228 : vector<1x256xf32> to vector<4x256xf32>
    %231 = arith.mulf %229, %230 : vector<4x256xf32>
    %232 = arith.addf %226, %231 : vector<4x256xf32>
    %233 = vector.extract_strided_slice %37 {offsets = [0, 25], sizes = [4, 1], strides = [1, 1]} : vector<4x36xf32> to vector<4x1xf32>
    %234 = vector.extract_strided_slice %220 {offsets = [2, 0], sizes = [1, 256], strides = [1, 1]} : vector<4x256xf32> to vector<1x256xf32>
    %235 = vector.broadcast %233 : vector<4x1xf32> to vector<4x256xf32>
    %236 = vector.broadcast %234 : vector<1x256xf32> to vector<4x256xf32>
    %237 = arith.mulf %235, %236 : vector<4x256xf32>
    %238 = arith.addf %232, %237 : vector<4x256xf32>
    %239 = vector.extract_strided_slice %37 {offsets = [0, 34], sizes = [4, 1], strides = [1, 1]} : vector<4x36xf32> to vector<4x1xf32>
    %240 = vector.extract_strided_slice %220 {offsets = [3, 0], sizes = [1, 256], strides = [1, 1]} : vector<4x256xf32> to vector<1x256xf32>
    %241 = vector.broadcast %239 : vector<4x1xf32> to vector<4x256xf32>
    %242 = vector.broadcast %240 : vector<1x256xf32> to vector<4x256xf32>
    %243 = arith.mulf %241, %242 : vector<4x256xf32>
    %244 = arith.addf %238, %243 : vector<4x256xf32>
    %245 = vector.extract_strided_slice %41 {offsets = [0, 145], sizes = [4, 256], strides = [1, 1]} : vector<4x512xf32> to vector<4x256xf32>
    %246 = vector.extract_strided_slice %37 {offsets = [0, 8], sizes = [4, 1], strides = [1, 1]} : vector<4x36xf32> to vector<4x1xf32>
    %247 = vector.extract_strided_slice %245 {offsets = [0, 0], sizes = [1, 256], strides = [1, 1]} : vector<4x256xf32> to vector<1x256xf32>
    %248 = vector.broadcast %246 : vector<4x1xf32> to vector<4x256xf32>
    %249 = vector.broadcast %247 : vector<1x256xf32> to vector<4x256xf32>
    %250 = arith.mulf %248, %249 : vector<4x256xf32>
    %251 = arith.addf %244, %250 : vector<4x256xf32>
    %252 = vector.extract_strided_slice %37 {offsets = [0, 17], sizes = [4, 1], strides = [1, 1]} : vector<4x36xf32> to vector<4x1xf32>
    %253 = vector.extract_strided_slice %245 {offsets = [1, 0], sizes = [1, 256], strides = [1, 1]} : vector<4x256xf32> to vector<1x256xf32>
    %254 = vector.broadcast %252 : vector<4x1xf32> to vector<4x256xf32>
    %255 = vector.broadcast %253 : vector<1x256xf32> to vector<4x256xf32>
    %256 = arith.mulf %254, %255 : vector<4x256xf32>
    %257 = arith.addf %251, %256 : vector<4x256xf32>
    %258 = vector.extract_strided_slice %37 {offsets = [0, 26], sizes = [4, 1], strides = [1, 1]} : vector<4x36xf32> to vector<4x1xf32>
    %259 = vector.extract_strided_slice %245 {offsets = [2, 0], sizes = [1, 256], strides = [1, 1]} : vector<4x256xf32> to vector<1x256xf32>
    %260 = vector.broadcast %258 : vector<4x1xf32> to vector<4x256xf32>
    %261 = vector.broadcast %259 : vector<1x256xf32> to vector<4x256xf32>
    %262 = arith.mulf %260, %261 : vector<4x256xf32>
    %263 = arith.addf %257, %262 : vector<4x256xf32>
    %264 = vector.extract_strided_slice %37 {offsets = [0, 35], sizes = [4, 1], strides = [1, 1]} : vector<4x36xf32> to vector<4x1xf32>
    %265 = vector.extract_strided_slice %245 {offsets = [3, 0], sizes = [1, 256], strides = [1, 1]} : vector<4x256xf32> to vector<1x256xf32>
    %266 = vector.broadcast %264 : vector<4x1xf32> to vector<4x256xf32>
    %267 = vector.broadcast %265 : vector<1x256xf32> to vector<4x256xf32>
    %268 = arith.mulf %266, %267 : vector<4x256xf32>
    %269 = arith.addf %263, %268 : vector<4x256xf32>
    %270 = arith.addf %117, %193 : vector<4x256xf32>
    %271 = arith.addf %270, %269 : vector<4x256xf32>
    %272 = vector.broadcast %38 : vector<4x1xf32> to vector<4x256xf32>
    %273 = arith.addf %271, %272 : vector<4x256xf32>
    %274 = vector.extract_strided_slice %39 {offsets = [0, 128], sizes = [4, 256], strides = [1, 1]} : vector<4x512xf32> to vector<4x256xf32>
    %275 = arith.addf %273, %274 : vector<4x256xf32>
    %c0_19 = arith.constant 0 : index
    %c0_20 = arith.constant 0 : index
    %276 = vector.load %arg4[%c0_19, %c0_20] : memref<8x256xf32, #tpu.memory_space<vmem>>, vector<4x256xf32>
    tpu.vector_store %arg4[%c0_19, %c0_20], %275 {strides = array<i32>} : memref<8x256xf32, #tpu.memory_space<vmem>>, vector<4x256xf32>,
    %cst_21 = arith.constant dense<0.000000e+00> : vector<4xf32>
    %277 = vector.multi_reduction <add>, %275, %cst_21 [1] : vector<4x256xf32> to vector<4xf32>
    %278 = vector.shape_cast %277 : vector<4xf32> to vector<4x1xf32>
    %cst_22 = arith.constant 3.906250e-03 : f32
    %279 = vector.broadcast %cst_22 : f32 to vector<4x1xf32>
    %280 = arith.mulf %278, %279 : vector<4x1xf32>
    %281 = vector.broadcast %280 : vector<4x1xf32> to vector<4x256xf32>
    %282 = arith.subf %275, %281 : vector<4x256xf32>
    %c0_23 = arith.constant 0 : index
    %c0_24 = arith.constant 0 : index
    %283 = vector.load %arg5[%c0_23, %c0_24] : memref<8x2xf32, #tpu.memory_space<vmem>>, vector<4x1xf32>
    tpu.vector_store %arg5[%c0_23, %c0_24], %280 {strides = array<i32>} : memref<8x2xf32, #tpu.memory_space<vmem>>, vector<4x1xf32>,
    %284 = arith.mulf %282, %282 : vector<4x256xf32>
    %cst_25 = arith.constant dense<0.000000e+00> : vector<4xf32>
    %285 = vector.multi_reduction <add>, %284, %cst_25 [1] : vector<4x256xf32> to vector<4xf32>
    %286 = vector.shape_cast %285 : vector<4xf32> to vector<4x1xf32>
    %c0_26 = arith.constant 0 : index
    %c1 = arith.constant 1 : index
    %287 = vector.load %arg5[%c0_26, %c1] : memref<8x2xf32, #tpu.memory_space<vmem>>, vector<4x1xf32>
    tpu.vector_store %arg5[%c0_26, %c1], %286 {strides = array<i32>} : memref<8x2xf32, #tpu.memory_space<vmem>>, vector<4x1xf32>,
    %288 = vector.extract_strided_slice %5 {offsets = [4, 0], sizes = [4, 512], strides = [1, 1]} : vector<8x512xf32> to vector<4x512xf32>
    %289 = vector.extract_strided_slice %30 {offsets = [4, 0], sizes = [4, 512], strides = [1, 1]} : vector<8x512xf32> to vector<4x512xf32>
    %290 = vector.extract_strided_slice %36 {offsets = [4, 0], sizes = [4, 512], strides = [1, 1]} : vector<8x512xf32> to vector<4x512xf32>
    %cst_27 = arith.constant 0.000000e+00 : f32
    %291 = vector.broadcast %cst_27 : f32 to vector<4x256xf32>
    %292 = vector.extract_strided_slice %289 {offsets = [0, 111], sizes = [4, 256], strides = [1, 1]} : vector<4x512xf32> to vector<4x256xf32>
    %293 = vector.extract_strided_slice %37 {offsets = [0, 0], sizes = [4, 1], strides = [1, 1]} : vector<4x36xf32> to vector<4x1xf32>
    %294 = vector.extract_strided_slice %292 {offsets = [0, 0], sizes = [1, 256], strides = [1, 1]} : vector<4x256xf32> to vector<1x256xf32>
    %295 = vector.broadcast %293 : vector<4x1xf32> to vector<4x256xf32>
    %296 = vector.broadcast %294 : vector<1x256xf32> to vector<4x256xf32>
    %297 = arith.mulf %295, %296 : vector<4x256xf32>
    %298 = arith.addf %291, %297 : vector<4x256xf32>
    %299 = vector.extract_strided_slice %37 {offsets = [0, 9], sizes = [4, 1], strides = [1, 1]} : vector<4x36xf32> to vector<4x1xf32>
    %300 = vector.extract_strided_slice %292 {offsets = [1, 0], sizes = [1, 256], strides = [1, 1]} : vector<4x256xf32> to vector<1x256xf32>
    %301 = vector.broadcast %299 : vector<4x1xf32> to vector<4x256xf32>
    %302 = vector.broadcast %300 : vector<1x256xf32> to vector<4x256xf32>
    %303 = arith.mulf %301, %302 : vector<4x256xf32>
    %304 = arith.addf %298, %303 : vector<4x256xf32>
    %305 = vector.extract_strided_slice %37 {offsets = [0, 18], sizes = [4, 1], strides = [1, 1]} : vector<4x36xf32> to vector<4x1xf32>
    %306 = vector.extract_strided_slice %292 {offsets = [2, 0], sizes = [1, 256], strides = [1, 1]} : vector<4x256xf32> to vector<1x256xf32>
    %307 = vector.broadcast %305 : vector<4x1xf32> to vector<4x256xf32>
    %308 = vector.broadcast %306 : vector<1x256xf32> to vector<4x256xf32>
    %309 = arith.mulf %307, %308 : vector<4x256xf32>
    %310 = arith.addf %304, %309 : vector<4x256xf32>
    %311 = vector.extract_strided_slice %37 {offsets = [0, 27], sizes = [4, 1], strides = [1, 1]} : vector<4x36xf32> to vector<4x1xf32>
    %312 = vector.extract_strided_slice %292 {offsets = [3, 0], sizes = [1, 256], strides = [1, 1]} : vector<4x256xf32> to vector<1x256xf32>
    %313 = vector.broadcast %311 : vector<4x1xf32> to vector<4x256xf32>
    %314 = vector.broadcast %312 : vector<1x256xf32> to vector<4x256xf32>
    %315 = arith.mulf %313, %314 : vector<4x256xf32>
    %316 = arith.addf %310, %315 : vector<4x256xf32>
    %317 = vector.extract_strided_slice %288 {offsets = [0, 112], sizes = [4, 256], strides = [1, 1]} : vector<4x512xf32> to vector<4x256xf32>
    %318 = vector.extract_strided_slice %37 {offsets = [0, 1], sizes = [4, 1], strides = [1, 1]} : vector<4x36xf32> to vector<4x1xf32>
    %319 = vector.extract_strided_slice %317 {offsets = [0, 0], sizes = [1, 256], strides = [1, 1]} : vector<4x256xf32> to vector<1x256xf32>
    %320 = vector.broadcast %318 : vector<4x1xf32> to vector<4x256xf32>
    %321 = vector.broadcast %319 : vector<1x256xf32> to vector<4x256xf32>
    %322 = arith.mulf %320, %321 : vector<4x256xf32>
    %323 = arith.addf %316, %322 : vector<4x256xf32>
    %324 = vector.extract_strided_slice %37 {offsets = [0, 10], sizes = [4, 1], strides = [1, 1]} : vector<4x36xf32> to vector<4x1xf32>
    %325 = vector.extract_strided_slice %317 {offsets = [1, 0], sizes = [1, 256], strides = [1, 1]} : vector<4x256xf32> to vector<1x256xf32>
    %326 = vector.broadcast %324 : vector<4x1xf32> to vector<4x256xf32>
    %327 = vector.broadcast %325 : vector<1x256xf32> to vector<4x256xf32>
    %328 = arith.mulf %326, %327 : vector<4x256xf32>
    %329 = arith.addf %323, %328 : vector<4x256xf32>
    %330 = vector.extract_strided_slice %37 {offsets = [0, 19], sizes = [4, 1], strides = [1, 1]} : vector<4x36xf32> to vector<4x1xf32>
    %331 = vector.extract_strided_slice %317 {offsets = [2, 0], sizes = [1, 256], strides = [1, 1]} : vector<4x256xf32> to vector<1x256xf32>
    %332 = vector.broadcast %330 : vector<4x1xf32> to vector<4x256xf32>
    %333 = vector.broadcast %331 : vector<1x256xf32> to vector<4x256xf32>
    %334 = arith.mulf %332, %333 : vector<4x256xf32>
    %335 = arith.addf %329, %334 : vector<4x256xf32>
    %336 = vector.extract_strided_slice %37 {offsets = [0, 28], sizes = [4, 1], strides = [1, 1]} : vector<4x36xf32> to vector<4x1xf32>
    %337 = vector.extract_strided_slice %317 {offsets = [3, 0], sizes = [1, 256], strides = [1, 1]} : vector<4x256xf32> to vector<1x256xf32>
    %338 = vector.broadcast %336 : vector<4x1xf32> to vector<4x256xf32>
    %339 = vector.broadcast %337 : vector<1x256xf32> to vector<4x256xf32>
    %340 = arith.mulf %338, %339 : vector<4x256xf32>
    %341 = arith.addf %335, %340 : vector<4x256xf32>
    %342 = vector.extract_strided_slice %290 {offsets = [0, 113], sizes = [4, 256], strides = [1, 1]} : vector<4x512xf32> to vector<4x256xf32>
    %343 = vector.extract_strided_slice %37 {offsets = [0, 2], sizes = [4, 1], strides = [1, 1]} : vector<4x36xf32> to vector<4x1xf32>
    %344 = vector.extract_strided_slice %342 {offsets = [0, 0], sizes = [1, 256], strides = [1, 1]} : vector<4x256xf32> to vector<1x256xf32>
    %345 = vector.broadcast %343 : vector<4x1xf32> to vector<4x256xf32>
    %346 = vector.broadcast %344 : vector<1x256xf32> to vector<4x256xf32>
    %347 = arith.mulf %345, %346 : vector<4x256xf32>
    %348 = arith.addf %341, %347 : vector<4x256xf32>
    %349 = vector.extract_strided_slice %37 {offsets = [0, 11], sizes = [4, 1], strides = [1, 1]} : vector<4x36xf32> to vector<4x1xf32>
    %350 = vector.extract_strided_slice %342 {offsets = [1, 0], sizes = [1, 256], strides = [1, 1]} : vector<4x256xf32> to vector<1x256xf32>
    %351 = vector.broadcast %349 : vector<4x1xf32> to vector<4x256xf32>
    %352 = vector.broadcast %350 : vector<1x256xf32> to vector<4x256xf32>
    %353 = arith.mulf %351, %352 : vector<4x256xf32>
    %354 = arith.addf %348, %353 : vector<4x256xf32>
    %355 = vector.extract_strided_slice %37 {offsets = [0, 20], sizes = [4, 1], strides = [1, 1]} : vector<4x36xf32> to vector<4x1xf32>
    %356 = vector.extract_strided_slice %342 {offsets = [2, 0], sizes = [1, 256], strides = [1, 1]} : vector<4x256xf32> to vector<1x256xf32>
    %357 = vector.broadcast %355 : vector<4x1xf32> to vector<4x256xf32>
    %358 = vector.broadcast %356 : vector<1x256xf32> to vector<4x256xf32>
    %359 = arith.mulf %357, %358 : vector<4x256xf32>
    %360 = arith.addf %354, %359 : vector<4x256xf32>
    %361 = vector.extract_strided_slice %37 {offsets = [0, 29], sizes = [4, 1], strides = [1, 1]} : vector<4x36xf32> to vector<4x1xf32>
    %362 = vector.extract_strided_slice %342 {offsets = [3, 0], sizes = [1, 256], strides = [1, 1]} : vector<4x256xf32> to vector<1x256xf32>
    %363 = vector.broadcast %361 : vector<4x1xf32> to vector<4x256xf32>
    %364 = vector.broadcast %362 : vector<1x256xf32> to vector<4x256xf32>
    %365 = arith.mulf %363, %364 : vector<4x256xf32>
    %366 = arith.addf %360, %365 : vector<4x256xf32>
    %cst_28 = arith.constant 0.000000e+00 : f32
    %367 = vector.broadcast %cst_28 : f32 to vector<4x256xf32>
    %368 = vector.extract_strided_slice %289 {offsets = [0, 127], sizes = [4, 256], strides = [1, 1]} : vector<4x512xf32> to vector<4x256xf32>
    %369 = vector.extract_strided_slice %37 {offsets = [0, 3], sizes = [4, 1], strides = [1, 1]} : vector<4x36xf32> to vector<4x1xf32>
    %370 = vector.extract_strided_slice %368 {offsets = [0, 0], sizes = [1, 256], strides = [1, 1]} : vector<4x256xf32> to vector<1x256xf32>
    %371 = vector.broadcast %369 : vector<4x1xf32> to vector<4x256xf32>
    %372 = vector.broadcast %370 : vector<1x256xf32> to vector<4x256xf32>
    %373 = arith.mulf %371, %372 : vector<4x256xf32>
    %374 = arith.addf %367, %373 : vector<4x256xf32>
    %375 = vector.extract_strided_slice %37 {offsets = [0, 12], sizes = [4, 1], strides = [1, 1]} : vector<4x36xf32> to vector<4x1xf32>
    %376 = vector.extract_strided_slice %368 {offsets = [1, 0], sizes = [1, 256], strides = [1, 1]} : vector<4x256xf32> to vector<1x256xf32>
    %377 = vector.broadcast %375 : vector<4x1xf32> to vector<4x256xf32>
    %378 = vector.broadcast %376 : vector<1x256xf32> to vector<4x256xf32>
    %379 = arith.mulf %377, %378 : vector<4x256xf32>
    %380 = arith.addf %374, %379 : vector<4x256xf32>
    %381 = vector.extract_strided_slice %37 {offsets = [0, 21], sizes = [4, 1], strides = [1, 1]} : vector<4x36xf32> to vector<4x1xf32>
    %382 = vector.extract_strided_slice %368 {offsets = [2, 0], sizes = [1, 256], strides = [1, 1]} : vector<4x256xf32> to vector<1x256xf32>
    %383 = vector.broadcast %381 : vector<4x1xf32> to vector<4x256xf32>
    %384 = vector.broadcast %382 : vector<1x256xf32> to vector<4x256xf32>
    %385 = arith.mulf %383, %384 : vector<4x256xf32>
    %386 = arith.addf %380, %385 : vector<4x256xf32>
    %387 = vector.extract_strided_slice %37 {offsets = [0, 30], sizes = [4, 1], strides = [1, 1]} : vector<4x36xf32> to vector<4x1xf32>
    %388 = vector.extract_strided_slice %368 {offsets = [3, 0], sizes = [1, 256], strides = [1, 1]} : vector<4x256xf32> to vector<1x256xf32>
    %389 = vector.broadcast %387 : vector<4x1xf32> to vector<4x256xf32>
    %390 = vector.broadcast %388 : vector<1x256xf32> to vector<4x256xf32>
    %391 = arith.mulf %389, %390 : vector<4x256xf32>
    %392 = arith.addf %386, %391 : vector<4x256xf32>
    %393 = vector.extract_strided_slice %288 {offsets = [0, 128], sizes = [4, 256], strides = [1, 1]} : vector<4x512xf32> to vector<4x256xf32>
    %394 = vector.extract_strided_slice %37 {offsets = [0, 4], sizes = [4, 1], strides = [1, 1]} : vector<4x36xf32> to vector<4x1xf32>
    %395 = vector.extract_strided_slice %393 {offsets = [0, 0], sizes = [1, 256], strides = [1, 1]} : vector<4x256xf32> to vector<1x256xf32>
    %396 = vector.broadcast %394 : vector<4x1xf32> to vector<4x256xf32>
    %397 = vector.broadcast %395 : vector<1x256xf32> to vector<4x256xf32>
    %398 = arith.mulf %396, %397 : vector<4x256xf32>
    %399 = arith.addf %392, %398 : vector<4x256xf32>
    %400 = vector.extract_strided_slice %37 {offsets = [0, 13], sizes = [4, 1], strides = [1, 1]} : vector<4x36xf32> to vector<4x1xf32>
    %401 = vector.extract_strided_slice %393 {offsets = [1, 0], sizes = [1, 256], strides = [1, 1]} : vector<4x256xf32> to vector<1x256xf32>
    %402 = vector.broadcast %400 : vector<4x1xf32> to vector<4x256xf32>
    %403 = vector.broadcast %401 : vector<1x256xf32> to vector<4x256xf32>
    %404 = arith.mulf %402, %403 : vector<4x256xf32>
    %405 = arith.addf %399, %404 : vector<4x256xf32>
    %406 = vector.extract_strided_slice %37 {offsets = [0, 22], sizes = [4, 1], strides = [1, 1]} : vector<4x36xf32> to vector<4x1xf32>
    %407 = vector.extract_strided_slice %393 {offsets = [2, 0], sizes = [1, 256], strides = [1, 1]} : vector<4x256xf32> to vector<1x256xf32>
    %408 = vector.broadcast %406 : vector<4x1xf32> to vector<4x256xf32>
    %409 = vector.broadcast %407 : vector<1x256xf32> to vector<4x256xf32>
    %410 = arith.mulf %408, %409 : vector<4x256xf32>
    %411 = arith.addf %405, %410 : vector<4x256xf32>
    %412 = vector.extract_strided_slice %37 {offsets = [0, 31], sizes = [4, 1], strides = [1, 1]} : vector<4x36xf32> to vector<4x1xf32>
    %413 = vector.extract_strided_slice %393 {offsets = [3, 0], sizes = [1, 256], strides = [1, 1]} : vector<4x256xf32> to vector<1x256xf32>
    %414 = vector.broadcast %412 : vector<4x1xf32> to vector<4x256xf32>
    %415 = vector.broadcast %413 : vector<1x256xf32> to vector<4x256xf32>
    %416 = arith.mulf %414, %415 : vector<4x256xf32>
    %417 = arith.addf %411, %416 : vector<4x256xf32>
    %418 = vector.extract_strided_slice %290 {offsets = [0, 129], sizes = [4, 256], strides = [1, 1]} : vector<4x512xf32> to vector<4x256xf32>
    %419 = vector.extract_strided_slice %37 {offsets = [0, 5], sizes = [4, 1], strides = [1, 1]} : vector<4x36xf32> to vector<4x1xf32>
    %420 = vector.extract_strided_slice %418 {offsets = [0, 0], sizes = [1, 256], strides = [1, 1]} : vector<4x256xf32> to vector<1x256xf32>
    %421 = vector.broadcast %419 : vector<4x1xf32> to vector<4x256xf32>
    %422 = vector.broadcast %420 : vector<1x256xf32> to vector<4x256xf32>
    %423 = arith.mulf %421, %422 : vector<4x256xf32>
    %424 = arith.addf %417, %423 : vector<4x256xf32>
    %425 = vector.extract_strided_slice %37 {offsets = [0, 14], sizes = [4, 1], strides = [1, 1]} : vector<4x36xf32> to vector<4x1xf32>
    %426 = vector.extract_strided_slice %418 {offsets = [1, 0], sizes = [1, 256], strides = [1, 1]} : vector<4x256xf32> to vector<1x256xf32>
    %427 = vector.broadcast %425 : vector<4x1xf32> to vector<4x256xf32>
    %428 = vector.broadcast %426 : vector<1x256xf32> to vector<4x256xf32>
    %429 = arith.mulf %427, %428 : vector<4x256xf32>
    %430 = arith.addf %424, %429 : vector<4x256xf32>
    %431 = vector.extract_strided_slice %37 {offsets = [0, 23], sizes = [4, 1], strides = [1, 1]} : vector<4x36xf32> to vector<4x1xf32>
    %432 = vector.extract_strided_slice %418 {offsets = [2, 0], sizes = [1, 256], strides = [1, 1]} : vector<4x256xf32> to vector<1x256xf32>
    %433 = vector.broadcast %431 : vector<4x1xf32> to vector<4x256xf32>
    %434 = vector.broadcast %432 : vector<1x256xf32> to vector<4x256xf32>
    %435 = arith.mulf %433, %434 : vector<4x256xf32>
    %436 = arith.addf %430, %435 : vector<4x256xf32>
    %437 = vector.extract_strided_slice %37 {offsets = [0, 32], sizes = [4, 1], strides = [1, 1]} : vector<4x36xf32> to vector<4x1xf32>
    %438 = vector.extract_strided_slice %418 {offsets = [3, 0], sizes = [1, 256], strides = [1, 1]} : vector<4x256xf32> to vector<1x256xf32>
    %439 = vector.broadcast %437 : vector<4x1xf32> to vector<4x256xf32>
    %440 = vector.broadcast %438 : vector<1x256xf32> to vector<4x256xf32>
    %441 = arith.mulf %439, %440 : vector<4x256xf32>
    %442 = arith.addf %436, %441 : vector<4x256xf32>
    %cst_29 = arith.constant 0.000000e+00 : f32
    %443 = vector.broadcast %cst_29 : f32 to vector<4x256xf32>
    %444 = vector.extract_strided_slice %289 {offsets = [0, 143], sizes = [4, 256], strides = [1, 1]} : vector<4x512xf32> to vector<4x256xf32>
    %445 = vector.extract_strided_slice %37 {offsets = [0, 6], sizes = [4, 1], strides = [1, 1]} : vector<4x36xf32> to vector<4x1xf32>
    %446 = vector.extract_strided_slice %444 {offsets = [0, 0], sizes = [1, 256], strides = [1, 1]} : vector<4x256xf32> to vector<1x256xf32>
    %447 = vector.broadcast %445 : vector<4x1xf32> to vector<4x256xf32>
    %448 = vector.broadcast %446 : vector<1x256xf32> to vector<4x256xf32>
    %449 = arith.mulf %447, %448 : vector<4x256xf32>
    %450 = arith.addf %443, %449 : vector<4x256xf32>
    %451 = vector.extract_strided_slice %37 {offsets = [0, 15], sizes = [4, 1], strides = [1, 1]} : vector<4x36xf32> to vector<4x1xf32>
    %452 = vector.extract_strided_slice %444 {offsets = [1, 0], sizes = [1, 256], strides = [1, 1]} : vector<4x256xf32> to vector<1x256xf32>
    %453 = vector.broadcast %451 : vector<4x1xf32> to vector<4x256xf32>
    %454 = vector.broadcast %452 : vector<1x256xf32> to vector<4x256xf32>
    %455 = arith.mulf %453, %454 : vector<4x256xf32>
    %456 = arith.addf %450, %455 : vector<4x256xf32>
    %457 = vector.extract_strided_slice %37 {offsets = [0, 24], sizes = [4, 1], strides = [1, 1]} : vector<4x36xf32> to vector<4x1xf32>
    %458 = vector.extract_strided_slice %444 {offsets = [2, 0], sizes = [1, 256], strides = [1, 1]} : vector<4x256xf32> to vector<1x256xf32>
    %459 = vector.broadcast %457 : vector<4x1xf32> to vector<4x256xf32>
    %460 = vector.broadcast %458 : vector<1x256xf32> to vector<4x256xf32>
    %461 = arith.mulf %459, %460 : vector<4x256xf32>
    %462 = arith.addf %456, %461 : vector<4x256xf32>
    %463 = vector.extract_strided_slice %37 {offsets = [0, 33], sizes = [4, 1], strides = [1, 1]} : vector<4x36xf32> to vector<4x1xf32>
    %464 = vector.extract_strided_slice %444 {offsets = [3, 0], sizes = [1, 256], strides = [1, 1]} : vector<4x256xf32> to vector<1x256xf32>
    %465 = vector.broadcast %463 : vector<4x1xf32> to vector<4x256xf32>
    %466 = vector.broadcast %464 : vector<1x256xf32> to vector<4x256xf32>
    %467 = arith.mulf %465, %466 : vector<4x256xf32>
    %468 = arith.addf %462, %467 : vector<4x256xf32>
    %469 = vector.extract_strided_slice %288 {offsets = [0, 144], sizes = [4, 256], strides = [1, 1]} : vector<4x512xf32> to vector<4x256xf32>
    %470 = vector.extract_strided_slice %37 {offsets = [0, 7], sizes = [4, 1], strides = [1, 1]} : vector<4x36xf32> to vector<4x1xf32>
    %471 = vector.extract_strided_slice %469 {offsets = [0, 0], sizes = [1, 256], strides = [1, 1]} : vector<4x256xf32> to vector<1x256xf32>
    %472 = vector.broadcast %470 : vector<4x1xf32> to vector<4x256xf32>
    %473 = vector.broadcast %471 : vector<1x256xf32> to vector<4x256xf32>
    %474 = arith.mulf %472, %473 : vector<4x256xf32>
    %475 = arith.addf %468, %474 : vector<4x256xf32>
    %476 = vector.extract_strided_slice %37 {offsets = [0, 16], sizes = [4, 1], strides = [1, 1]} : vector<4x36xf32> to vector<4x1xf32>
    %477 = vector.extract_strided_slice %469 {offsets = [1, 0], sizes = [1, 256], strides = [1, 1]} : vector<4x256xf32> to vector<1x256xf32>
    %478 = vector.broadcast %476 : vector<4x1xf32> to vector<4x256xf32>
    %479 = vector.broadcast %477 : vector<1x256xf32> to vector<4x256xf32>
    %480 = arith.mulf %478, %479 : vector<4x256xf32>
    %481 = arith.addf %475, %480 : vector<4x256xf32>
    %482 = vector.extract_strided_slice %37 {offsets = [0, 25], sizes = [4, 1], strides = [1, 1]} : vector<4x36xf32> to vector<4x1xf32>
    %483 = vector.extract_strided_slice %469 {offsets = [2, 0], sizes = [1, 256], strides = [1, 1]} : vector<4x256xf32> to vector<1x256xf32>
    %484 = vector.broadcast %482 : vector<4x1xf32> to vector<4x256xf32>
    %485 = vector.broadcast %483 : vector<1x256xf32> to vector<4x256xf32>
    %486 = arith.mulf %484, %485 : vector<4x256xf32>
    %487 = arith.addf %481, %486 : vector<4x256xf32>
    %488 = vector.extract_strided_slice %37 {offsets = [0, 34], sizes = [4, 1], strides = [1, 1]} : vector<4x36xf32> to vector<4x1xf32>
    %489 = vector.extract_strided_slice %469 {offsets = [3, 0], sizes = [1, 256], strides = [1, 1]} : vector<4x256xf32> to vector<1x256xf32>
    %490 = vector.broadcast %488 : vector<4x1xf32> to vector<4x256xf32>
    %491 = vector.broadcast %489 : vector<1x256xf32> to vector<4x256xf32>
    %492 = arith.mulf %490, %491 : vector<4x256xf32>
    %493 = arith.addf %487, %492 : vector<4x256xf32>
    %494 = vector.extract_strided_slice %290 {offsets = [0, 145], sizes = [4, 256], strides = [1, 1]} : vector<4x512xf32> to vector<4x256xf32>
    %495 = vector.extract_strided_slice %37 {offsets = [0, 8], sizes = [4, 1], strides = [1, 1]} : vector<4x36xf32> to vector<4x1xf32>
    %496 = vector.extract_strided_slice %494 {offsets = [0, 0], sizes = [1, 256], strides = [1, 1]} : vector<4x256xf32> to vector<1x256xf32>
    %497 = vector.broadcast %495 : vector<4x1xf32> to vector<4x256xf32>
    %498 = vector.broadcast %496 : vector<1x256xf32> to vector<4x256xf32>
    %499 = arith.mulf %497, %498 : vector<4x256xf32>
    %500 = arith.addf %493, %499 : vector<4x256xf32>
    %501 = vector.extract_strided_slice %37 {offsets = [0, 17], sizes = [4, 1], strides = [1, 1]} : vector<4x36xf32> to vector<4x1xf32>
    %502 = vector.extract_strided_slice %494 {offsets = [1, 0], sizes = [1, 256], strides = [1, 1]} : vector<4x256xf32> to vector<1x256xf32>
    %503 = vector.broadcast %501 : vector<4x1xf32> to vector<4x256xf32>
    %504 = vector.broadcast %502 : vector<1x256xf32> to vector<4x256xf32>
    %505 = arith.mulf %503, %504 : vector<4x256xf32>
    %506 = arith.addf %500, %505 : vector<4x256xf32>
    %507 = vector.extract_strided_slice %37 {offsets = [0, 26], sizes = [4, 1], strides = [1, 1]} : vector<4x36xf32> to vector<4x1xf32>
    %508 = vector.extract_strided_slice %494 {offsets = [2, 0], sizes = [1, 256], strides = [1, 1]} : vector<4x256xf32> to vector<1x256xf32>
    %509 = vector.broadcast %507 : vector<4x1xf32> to vector<4x256xf32>
    %510 = vector.broadcast %508 : vector<1x256xf32> to vector<4x256xf32>
    %511 = arith.mulf %509, %510 : vector<4x256xf32>
    %512 = arith.addf %506, %511 : vector<4x256xf32>
    %513 = vector.extract_strided_slice %37 {offsets = [0, 35], sizes = [4, 1], strides = [1, 1]} : vector<4x36xf32> to vector<4x1xf32>
    %514 = vector.extract_strided_slice %494 {offsets = [3, 0], sizes = [1, 256], strides = [1, 1]} : vector<4x256xf32> to vector<1x256xf32>
    %515 = vector.broadcast %513 : vector<4x1xf32> to vector<4x256xf32>
    %516 = vector.broadcast %514 : vector<1x256xf32> to vector<4x256xf32>
    %517 = arith.mulf %515, %516 : vector<4x256xf32>
    %518 = arith.addf %512, %517 : vector<4x256xf32>
    %519 = arith.addf %366, %442 : vector<4x256xf32>
    %520 = arith.addf %519, %518 : vector<4x256xf32>
    %521 = vector.broadcast %38 : vector<4x1xf32> to vector<4x256xf32>
    %522 = arith.addf %520, %521 : vector<4x256xf32>
    %523 = vector.extract_strided_slice %288 {offsets = [0, 128], sizes = [4, 256], strides = [1, 1]} : vector<4x512xf32> to vector<4x256xf32>
    %524 = arith.addf %522, %523 : vector<4x256xf32>
    %c4 = arith.constant 4 : index
    %c0_30 = arith.constant 0 : index
    %525 = vector.load %arg4[%c4, %c0_30] : memref<8x256xf32, #tpu.memory_space<vmem>>, vector<4x256xf32>
    tpu.vector_store %arg4[%c4, %c0_30], %524 {strides = array<i32>} : memref<8x256xf32, #tpu.memory_space<vmem>>, vector<4x256xf32>,
    %cst_31 = arith.constant dense<0.000000e+00> : vector<4xf32>
    %526 = vector.multi_reduction <add>, %524, %cst_31 [1] : vector<4x256xf32> to vector<4xf32>
    %527 = vector.shape_cast %526 : vector<4xf32> to vector<4x1xf32>
    %cst_32 = arith.constant 3.906250e-03 : f32
    %528 = vector.broadcast %cst_32 : f32 to vector<4x1xf32>
    %529 = arith.mulf %527, %528 : vector<4x1xf32>
    %530 = vector.broadcast %529 : vector<4x1xf32> to vector<4x256xf32>
    %531 = arith.subf %524, %530 : vector<4x256xf32>
    %c4_33 = arith.constant 4 : index
    %c0_34 = arith.constant 0 : index
    %532 = vector.load %arg5[%c4_33, %c0_34] : memref<8x2xf32, #tpu.memory_space<vmem>>, vector<4x1xf32>
    tpu.vector_store %arg5[%c4_33, %c0_34], %529 {strides = array<i32>} : memref<8x2xf32, #tpu.memory_space<vmem>>, vector<4x1xf32>,
    %533 = arith.mulf %531, %531 : vector<4x256xf32>
    %cst_35 = arith.constant dense<0.000000e+00> : vector<4xf32>
    %534 = vector.multi_reduction <add>, %533, %cst_35 [1] : vector<4x256xf32> to vector<4xf32>
    %535 = vector.shape_cast %534 : vector<4xf32> to vector<4x1xf32>
    %c4_36 = arith.constant 4 : index
    %c1_37 = arith.constant 1 : index
    %536 = vector.load %arg5[%c4_36, %c1_37] : memref<8x2xf32, #tpu.memory_space<vmem>>, vector<4x1xf32>
    tpu.vector_store %arg5[%c4_36, %c1_37], %535 {strides = array<i32>} : memref<8x2xf32, #tpu.memory_space<vmem>>, vector<4x1xf32>,
    return
  }
  func.func @transform_0(%arg0: i32) -> (i32, i32) {
    %c0_i32 = arith.constant 0 : i32
    %c0_i32_0 = arith.constant 0 : i32
    return %arg0, %c0_i32 : i32, i32
  }
  func.func @transform_1(%arg0: i32) -> (i32, i32) {
    %c0_i32 = arith.constant 0 : i32
    %c0_i32_0 = arith.constant 0 : i32
    %c0_i32_1 = arith.constant 0 : i32
    return %c0_i32, %c0_i32_0 : i32, i32
  }
  func.func @transform_2(%arg0: i32) -> (i32, i32) {
    %c0_i32 = arith.constant 0 : i32
    %c0_i32_0 = arith.constant 0 : i32
    %c0_i32_1 = arith.constant 0 : i32
    return %c0_i32, %c0_i32_0 : i32, i32
  }
  func.func @transform_3(%arg0: i32) -> (i32, i32) {
    %c0_i32 = arith.constant 0 : i32
    %c0_i32_0 = arith.constant 0 : i32
    return %arg0, %c0_i32 : i32, i32
  }
  func.func @transform_4(%arg0: i32) -> (i32, i32) {
    %c0_i32 = arith.constant 0 : i32
    %c0_i32_0 = arith.constant 0 : i32
    return %arg0, %c0_i32 : i32, i32
  }
}

module attributes {stable_mosaic.version = 11 : i64} {
  func.func @resblock_bn_kernel(%arg0: i32, %arg1: memref<8x256xf32, #tpu.memory_space<vmem>>, %arg2: memref<8x2xf32, #tpu.memory_space<vmem>>, %arg3: memref<8x256xf32, #tpu.memory_space<vmem>>) attributes {dimension_semantics = [#tpu.dimension_semantics<parallel>], iteration_bounds = array<i64: 1>, scalar_prefetch = 0 : i64, scratch_operands = 0 : i64, tpu.core_type = #tpu.core_type<tc>, window_params = [{transform_indices = @transform_0, window_bounds = array<i64: 8, 256>}, {transform_indices = @transform_1, window_bounds = array<i64: 8, 2>}, {transform_indices = @transform_2, window_bounds = array<i64: 8, 256>}]} {
    %c0 = arith.constant 0 : index
    %c0_0 = arith.constant 0 : index
    %0 = vector.load %arg1[%c0, %c0_0] : memref<8x256xf32, #tpu.memory_space<vmem>>, vector<8x256xf32>
    %c0_1 = arith.constant 0 : index
    %c0_2 = arith.constant 0 : index
    %1 = vector.load %arg2[%c0_1, %c0_2] : memref<8x2xf32, #tpu.memory_space<vmem>>, vector<8x2xf32>
    %2 = vector.extract_strided_slice %1 {offsets = [0, 0], sizes = [8, 1], strides = [1, 1]} : vector<8x2xf32> to vector<8x1xf32>
    %3 = vector.broadcast %2 : vector<8x1xf32> to vector<8x256xf32>
    %4 = arith.mulf %0, %3 : vector<8x256xf32>
    %5 = vector.extract_strided_slice %1 {offsets = [0, 1], sizes = [8, 1], strides = [1, 1]} : vector<8x2xf32> to vector<8x1xf32>
    %6 = vector.broadcast %5 : vector<8x1xf32> to vector<8x256xf32>
    %7 = arith.addf %4, %6 : vector<8x256xf32>
    %8 = arith.addf %7, %0 : vector<8x256xf32>
    %cst = arith.constant 0.000000e+00 : f32
    %9 = vector.broadcast %cst : f32 to vector<8x256xf32>
    %10 = arith.maximumf %8, %9 : vector<8x256xf32>
    %11 = arith.addf %10, %8 : vector<8x256xf32>
    %c0_3 = arith.constant 0 : index
    %c0_4 = arith.constant 0 : index
    %12 = vector.load %arg3[%c0_3, %c0_4] : memref<8x256xf32, #tpu.memory_space<vmem>>, vector<8x256xf32>
    tpu.vector_store %arg3[%c0_3, %c0_4], %11 {strides = array<i32>} : memref<8x256xf32, #tpu.memory_space<vmem>>, vector<8x256xf32>,
    return
  }
  func.func @transform_0(%arg0: i32) -> (i32, i32) {
    %c0_i32 = arith.constant 0 : i32
    %c0_i32_0 = arith.constant 0 : i32
    return %arg0, %c0_i32 : i32, i32
  }
  func.func @transform_1(%arg0: i32) -> (i32, i32) {
    %c0_i32 = arith.constant 0 : i32
    %c0_i32_0 = arith.constant 0 : i32
    return %arg0, %c0_i32 : i32, i32
  }
  func.func @transform_2(%arg0: i32) -> (i32, i32) {
    %c0_i32 = arith.constant 0 : i32
    %c0_i32_0 = arith.constant 0 : i32
    return %arg0, %c0_i32 : i32, i32
  }
}

</mosaic_0001>

<llo_original>
// kernel: resblock_forward.3
$region0: #{resblock_forward.3}
  #allocation0 [shape = 'u32[]', space=smem, size = 0x4, offset = 0x4, fixed_abs, tag = 'smem constant byte address 0x4 - core index']
  #allocation1 [shape = 'u32[144,128]{1,0:T(1,128)}', space=vmem, size = 0x12000, scoped, tag = 'internal scratch']
  %s0 = inlined_call_operand.vmem [shape: f32[8,256], index: 0, kind: input, shape index: {}]
  %s1 = inlined_call_operand.vmem [shape: f32[8,2], index: 1, kind: input, shape index: {}]
  %s2 = inlined_call_operand.vmem [shape: f32[8,256], index: 2, kind: output, shape index: {}]
  %s3 = sld [smem:[#allocation0]]
  $region18: #{resblock_forward.3} parent=0
    _
  %s5 = ssub.s32 1, %s3
  %s6 = scalar_select 0, %s5, %s3
  // Predicated region
  $region2: #{resblock_forward.3} parent=0 // pred_check
    _
  $region3: #{resblock_forward.3} parent=0 // pred_check_branch
    %8 = sbr.rel (0) target = $region5
  $region4: #{resblock_forward.3} parent=0 // pred_region
    _
  $region5: #{resblock_forward.3} parent=0 // pred_fallthru
    _
  // Predicated region
  $region6: #{resblock_forward.3} parent=0 // pred_check
    _
  $region7: #{resblock_forward.3} parent=0 // pred_check_branch
    %10 = sbr.rel (0) target = $region9
  $region8: #{resblock_forward.3} parent=0 // pred_region
    _
  $region9: #{resblock_forward.3} parent=0 // pred_fallthru
    _
  %v11 = vld [vmem:[%s0] sm:$0xff]
  %v12 = vld [vmem:[%s0 + $0x8] sm:$0xff]
  %v13 = vld [vmem:[%s1] sm:$0xff]
  %15 = vset.pattern.permute.xlu0 0
  %16 = vperm.xlu0 %15, %v13
  %v17 = vpop.permute.xlu0 %16
  %v19 = vmul.f32 %v11, %v17
  %v20 = vmul.f32 %v12, %v17
  %21 = vset.pattern.permute.xlu0 1
  %22 = vperm.xlu0 %21, %v13
  %v23 = vpop.permute.xlu0 %22
  %v25 = vadd.f32 %v19, %v23
  %v26 = vadd.f32 %v20, %v23
  %v27 = vadd.f32 %v25, %v11
  %v28 = vadd.f32 %v26, %v12
  %v29 = vmax.f32 %v27, 0.0
  %v30 = vmax.f32 %v28, 0.0
  %v31 = vadd.f32 %v29, %v27
  %v32 = vadd.f32 %v30, %v28
  %33 = vst [vmem:[%s2] sm:$0xff] %v31
  %34 = vst [vmem:[%s2 + $0x8] sm:$0xff] %v32
  // Predicated region
  $region10: #{resblock_forward.3} parent=0 // pred_check
    _
  $region11: #{resblock_forward.3} parent=0 // pred_check_branch
    %36 = sbr.rel (0) target = $region13
  $region12: #{resblock_forward.3} parent=0 // pred_region
    _
  $region13: #{resblock_forward.3} parent=0 // pred_fallthru
    _
  // Predicated region
  $region14: #{resblock_forward.3} parent=0 // pred_check
    _
  $region15: #{resblock_forward.3} parent=0 // pred_check_branch
    %38 = sbr.rel (0) target = $region17
  $region16: #{resblock_forward.3} parent=0 // pred_region
    _
  $region17: #{resblock_forward.3} parent=0 // pred_fallthru
    _

// kernel: resblock_forward.2
$region0: #{resblock_forward.2}
  #allocation0 [shape = 'u32[]', space=smem, size = 0x4, offset = 0x4, fixed_abs, tag = 'smem constant byte address 0x4 - core index']
  #allocation1 [shape = 'u32[144,128]{1,0:T(1,128)}', space=vmem, size = 0x12000, scoped, tag = 'internal scratch']
  #allocation2 [shape = 'f32[8,512]{1,0:T(8,128)}', space=vmem, size = 0x4000, scoped, tag = 'scratch operand']
  %s0 = inlined_call_operand.vmem [shape: f32[8,256], index: 0, kind: input, shape index: {}]
  %s1 = inlined_call_operand.vmem [shape: f32[4,36], index: 1, kind: input, shape index: {}]
  %s2 = inlined_call_operand.vmem [shape: f32[4,1], index: 2, kind: input, shape index: {}]
  %s3 = inlined_call_operand.vmem [shape: f32[8,256], index: 3, kind: output, shape index: {0}]
  %s4 = inlined_call_operand.vmem [shape: f32[8,2], index: 4, kind: output, shape index: {1}]
  %5 = xla_tuple %s3, %s4
  %s6 = sld [smem:[#allocation0]]
  $region30: #{resblock_forward.2} parent=0
    _
  %s8 = ssub.s32 1, %s6
  %s9 = scalar_select 0, %s8, %s6
  // Predicated region
  $region2: #{resblock_forward.2} parent=0 // pred_check
    _
  $region3: #{resblock_forward.2} parent=0 // pred_check_branch
    %11 = sbr.rel (0) target = $region5
  $region4: #{resblock_forward.2} parent=0 // pred_region
    _
  $region5: #{resblock_forward.2} parent=0 // pred_fallthru
    _
  // Predicated region
  $region6: #{resblock_forward.2} parent=0 // pred_check
    _
  $region7: #{resblock_forward.2} parent=0 // pred_check_branch
    %13 = sbr.rel (0) target = $region9
  $region8: #{resblock_forward.2} parent=0 // pred_region
    _
  $region9: #{resblock_forward.2} parent=0 // pred_fallthru
    _
  // Predicated region
  $region10: #{resblock_forward.2} parent=0 // pred_check
    _
  $region11: #{resblock_forward.2} parent=0 // pred_check_branch
    %15 = sbr.rel (0) target = $region13
  $region12: #{resblock_forward.2} parent=0 // pred_region
    _
  $region13: #{resblock_forward.2} parent=0 // pred_fallthru
    _
  %16 = vst [vmem:[#allocation2] sm:$0xff] 0.0
  %17 = vst [vmem:[#allocation2 + $0x18] sm:$0xff] 0.0
  %v18 = vld [vmem:[%s0] sm:$0xff]
  %v19 = vld [vmem:[%s0 + $0x8] sm:$0xff]
  %20 = vst [vmem:[#allocation2 + $0x8] sm:$0xff] %v18
  %21 = vst [vmem:[#allocation2 + $0x10] sm:$0xff] %v19
  %v22 = vld [vmem:[#allocation2] sm:$0xff]
  %v23 = vld [vmem:[#allocation2 + $0x8] sm:$0xff]
  %v24 = vld [vmem:[#allocation2 + $0x10] sm:$0xff]
  %v25 = vld [vmem:[#allocation2 + $0x18] sm:$0xff]
  %v26 = vlaneseq
  %v27 = vand.u32 %v26, 127
  %v28 = vadd.s32 %v27, 128
  %v29 = vadd.s32 %v27, 256
  %v30 = vadd.s32 %v27, 384
  %vm31 = vcmp.lt.s32.totalorder %v27, 0
  %v32 = vsub.s32 0, %v27
  %v33 = vsel %vm31, %v32, %v27
  %v34 = vshrl.u32 %v33, 4
  %v35 = vand.u32 %v33, 15
  %v36 = vsub.s32 0, %v35
  %v37 = vsel %vm31, %v36, %v35
  %vm38 = vcmp.lt.s32.totalorder %v28, 0
  %v39 = vsub.s32 0, %v28
  %v40 = vsel %vm38, %v39, %v28
  %v41 = vshrl.u32 %v40, 4
  %v42 = vand.u32 %v40, 15
  %v43 = vsub.s32 0, %v42
  %v44 = vsel %vm38, %v43, %v42
  %vm45 = vcmp.lt.s32.totalorder %v29, 0
  %v46 = vsub.s32 0, %v29
  %v47 = vsel %vm45, %v46, %v29
  %v48 = vshrl.u32 %v47, 4
  %v49 = vand.u32 %v47, 15
  %v50 = vsub.s32 0, %v49
  %v51 = vsel %vm45, %v50, %v49
  %vm52 = vcmp.lt.s32.totalorder %v30, 0
  %v53 = vsub.s32 0, %v30
  %v54 = vsel %vm52, %v53, %v30
  %v55 = vshrl.u32 %v54, 4
  %v56 = vand.u32 %v54, 15
  %v57 = vsub.s32 0, %v56
  %v58 = vsel %vm52, %v57, %v56
  %vm59 = vcmp.ne.s32.totalorder %v37, 0
  %vm60 = vcmp.ne.s32.totalorder %v44, 0
  %vm61 = vcmp.ne.s32.totalorder %v51, 0
  %vm62 = vcmp.ne.s32.totalorder %v58, 0
  %vm63 = vcmp.lt.s32.totalorder %v37, 0
  %vm64 = vcmp.lt.s32.totalorder %v44, 0
  %vm65 = vcmp.lt.s32.totalorder %v51, 0
  %vm66 = vcmp.lt.s32.totalorder %v58, 0
  %vm67 = vmand %vm63, %vm59
  %vm68 = vmand %vm64, %vm60
  %vm69 = vmand %vm65, %vm61
  %vm70 = vmand %vm66, %vm62
  %v71 = vadd.s32 %v37, 16
  %v72 = vadd.s32 %v44, 16
  %v73 = vadd.s32 %v51, 16
  %v74 = vadd.s32 %v58, 16
  %v75 = vsel %vm67, %v71, %v37
  %v76 = vsel %vm68, %v72, %v44
  %v77 = vsel %vm69, %v73, %v51
  %v78 = vsel %vm70, %v74, %v58
  %vm79 = vcmp.ne.s32.totalorder %v75, 15
  %vm80 = vcmp.ne.s32.totalorder %v76, 15
  %vm81 = vcmp.ne.s32.totalorder %v77, 15
  %vm82 = vcmp.ne.s32.totalorder %v78, 15
  %v83 = vsel %vm79, 1, 0
  %v84 = vsel %vm80, 1, 0
  %v85 = vsel %vm81, 1, 0
  %v86 = vsel %vm82, 1, 0
  %v87 = vcvt.s32.f32 %v83
  %v88 = vcvt.s32.f32 %v84
  %v89 = vcvt.s32.f32 %v85
  %v90 = vcvt.s32.f32 %v86
  %v91 = vmul.f32 %v22, %v87
  %v92 = vmul.f32 %v23, %v88
  %v93 = vmul.f32 %v24, %v89
  %v94 = vmul.f32 %v25, %v90
  %vm95 = vcmp.ne.s32.totalorder %v75, 0
  %vm96 = vcmp.ne.s32.totalorder %v76, 0
  %vm97 = vcmp.ne.s32.totalorder %v77, 0
  %vm98 = vcmp.ne.s32.totalorder %v78, 0
  %v99 = vsel %vm95, 1, 0
  %v100 = vsel %vm96, 1, 0
  %v101 = vsel %vm97, 1, 0
  %v102 = vsel %vm98, 1, 0
  %v103 = vcvt.s32.f32 %v99
  %v104 = vcvt.s32.f32 %v100
  %v105 = vcvt.s32.f32 %v101
  %v106 = vcvt.s32.f32 %v102
  %v107 = vmul.f32 %v22, %v103
  %v108 = vmul.f32 %v23, %v104
  %v109 = vmul.f32 %v24, %v105
  %v110 = vmul.f32 %v25, %v106
  %v111 = vld [vmem:[%s1] sm:$0xf]
  %v112 = vld [vmem:[%s2] sm:$0xf]
  %114 = vset.pattern.permute.xlu0 0
  %115 = vperm.xlu0 %114, %v111
  %v116 = vpop.permute.xlu0 %115
  %v118 = vlaneseq
  %v119 = vshrl.u32 %v118, 7
  %v120 = vsub.s32 0, %v119
  %v121 = vrot.slane %v91, %v120
  %v122 = vlaneseq
  %v123 = vshrl.u32 %v122, 7
  %v124 = vsub.s32 0, %v123
  %v125 = vrot.slane %v92, %v124
  %v126 = vlaneseq
  %v127 = vshrl.u32 %v126, 7
  %v128 = vsub.s32 0, %v127
  %v129 = vrot.slane %v93, %v128
  %v130 = vmul.f32 %v116, %v121
  %v131 = vmul.f32 %v116, %v125
  %v132 = vmul.f32 %v116, %v129
  %v133 = vadd.f32 %v130, 0.0
  %v134 = vadd.f32 %v131, 0.0
  %v135 = vadd.f32 %v132, 0.0
  %136 = vset.pattern.permute.xlu0 9
  %137 = vperm.xlu0 %136, %v111
  %v138 = vpop.permute.xlu0 %137
  %v140 = vlaneseq
  %v141 = vshrl.u32 %v140, 7
  %v142 = vsub.s32 1, %v141
  %v143 = vrot.slane %v91, %v142
  %v144 = vlaneseq
  %v145 = vshrl.u32 %v144, 7
  %v146 = vsub.s32 1, %v145
  %v147 = vrot.slane %v92, %v146
  %v148 = vlaneseq
  %v149 = vshrl.u32 %v148, 7
  %v150 = vsub.s32 1, %v149
  %v151 = vrot.slane %v93, %v150
  %v152 = vmul.f32 %v138, %v143
  %v153 = vmul.f32 %v138, %v147
  %v154 = vmul.f32 %v138, %v151
  %v155 = vadd.f32 %v133, %v152
  %v156 = vadd.f32 %v134, %v153
  %v157 = vadd.f32 %v135, %v154
  %158 = vset.pattern.permute.xlu0 18
  %159 = vperm.xlu0 %158, %v111
  %v160 = vpop.permute.xlu0 %159
  %v162 = vlaneseq
  %v163 = vshrl.u32 %v162, 7
  %v164 = vsub.s32 2, %v163
  %v165 = vrot.slane %v91, %v164
  %v166 = vlaneseq
  %v167 = vshrl.u32 %v166, 7
  %v168 = vsub.s32 2, %v167
  %v169 = vrot.slane %v92, %v168
  %v170 = vlaneseq
  %v171 = vshrl.u32 %v170, 7
  %v172 = vsub.s32 2, %v171
  %v173 = vrot.slane %v93, %v172
  %v174 = vmul.f32 %v160, %v165
  %v175 = vmul.f32 %v160, %v169
  %v176 = vmul.f32 %v160, %v173
  %v177 = vadd.f32 %v155, %v174
  %v178 = vadd.f32 %v156, %v175
  %v179 = vadd.f32 %v157, %v176
  %180 = vset.pattern.permute.xlu0 27
  %181 = vperm.xlu0 %180, %v111
  %v182 = vpop.permute.xlu0 %181
  %v184 = vlaneseq
  %v185 = vshrl.u32 %v184, 7
  %v186 = vsub.s32 3, %v185
  %v187 = vrot.slane %v91, %v186
  %v188 = vlaneseq
  %v189 = vshrl.u32 %v188, 7
  %v190 = vsub.s32 3, %v189
  %v191 = vrot.slane %v92, %v190
  %v192 = vlaneseq
  %v193 = vshrl.u32 %v192, 7
  %v194 = vsub.s32 3, %v193
  %v195 = vrot.slane %v93, %v194
  %v196 = vmul.f32 %v182, %v187
  %v197 = vmul.f32 %v182, %v191
  %v198 = vmul.f32 %v182, %v195
  %v199 = vadd.f32 %v177, %v196
  %v200 = vadd.f32 %v178, %v197
  %v201 = vadd.f32 %v179, %v198
  %202 = vset.pattern.permute.xlu0 1
  %203 = vperm.xlu0 %202, %v111
  %v204 = vpop.permute.xlu0 %203
  %v206 = vlaneseq
  %v207 = vshrl.u32 %v206, 7
  %v208 = vsub.s32 0, %v207
  %v209 = vrot.slane %v22, %v208
  %v210 = vlaneseq
  %v211 = vshrl.u32 %v210, 7
  %v212 = vsub.s32 0, %v211
  %v213 = vrot.slane %v23, %v212
  %v214 = vlaneseq
  %v215 = vshrl.u32 %v214, 7
  %v216 = vsub.s32 0, %v215
  %v217 = vrot.slane %v24, %v216
  %v218 = vmul.f32 %v204, %v209
  %v219 = vmul.f32 %v204, %v213
  %v220 = vmul.f32 %v204, %v217
  %224 = vrot.lane.b32.xlu0 %v218, 127
  %v225 = vpop.permute.xlu0 %224
  %226 = vrot.lane.b32.xlu0 %v219, 127
  %v227 = vpop.permute.xlu0 %226
  %228 = vrot.lane.b32.xlu0 %v220, 127
  %v229 = vpop.permute.xlu0 %228
  %vm230 = vcmask 1039360
  %v231 = vsel %vm230, %v225, %v227
  %v232 = vsel %vm230, %v227, %v229
  %v236 = vadd.f32 %v199, %v231
  %v237 = vadd.f32 %v200, %v232
  %v238 = vadd.f32 %v201, %v229
  %239 = vset.pattern.permute.xlu0 10
  %240 = vperm.xlu0 %239, %v111
  %v241 = vpop.permute.xlu0 %240
  %v243 = vlaneseq
  %v244 = vshrl.u32 %v243, 7
  %v245 = vsub.s32 1, %v244
  %v246 = vrot.slane %v22, %v245
  %v247 = vlaneseq
  %v248 = vshrl.u32 %v247, 7
  %v249 = vsub.s32 1, %v248
  %v250 = vrot.slane %v23, %v249
  %v251 = vlaneseq
  %v252 = vshrl.u32 %v251, 7
  %v253 = vsub.s32 1, %v252
  %v254 = vrot.slane %v24, %v253
  %v255 = vmul.f32 %v241, %v246
  %v256 = vmul.f32 %v241, %v250
  %v257 = vmul.f32 %v241, %v254
  %261 = vrot.lane.b32.xlu0 %v255, 127
  %v262 = vpop.permute.xlu0 %261
  %263 = vrot.lane.b32.xlu0 %v256, 127
  %v264 = vpop.permute.xlu0 %263
  %265 = vrot.lane.b32.xlu0 %v257, 127
  %v266 = vpop.permute.xlu0 %265
  %v267 = vsel %vm230, %v262, %v264
  %v268 = vsel %vm230, %v264, %v266
  %v272 = vadd.f32 %v236, %v267
  %v273 = vadd.f32 %v237, %v268
  %v274 = vadd.f32 %v238, %v266
  %275 = vset.pattern.permute.xlu0 19
  %276 = vperm.xlu0 %275, %v111
  %v277 = vpop.permute.xlu0 %276
  %v279 = vlaneseq
  %v280 = vshrl.u32 %v279, 7
  %v281 = vsub.s32 2, %v280
  %v282 = vrot.slane %v22, %v281
  %v283 = vlaneseq
  %v284 = vshrl.u32 %v283, 7
  %v285 = vsub.s32 2, %v284
  %v286 = vrot.slane %v23, %v285
  %v287 = vlaneseq
  %v288 = vshrl.u32 %v287, 7
  %v289 = vsub.s32 2, %v288
  %v290 = vrot.slane %v24, %v289
  %v291 = vmul.f32 %v277, %v282
  %v292 = vmul.f32 %v277, %v286
  %v293 = vmul.f32 %v277, %v290
  %297 = vrot.lane.b32.xlu0 %v291, 127
  %v298 = vpop.permute.xlu0 %297
  %299 = vrot.lane.b32.xlu0 %v292, 127
  %v300 = vpop.permute.xlu0 %299
  %301 = vrot.lane.b32.xlu0 %v293, 127
  %v302 = vpop.permute.xlu0 %301
  %v303 = vsel %vm230, %v298, %v300
  %v304 = vsel %vm230, %v300, %v302
  %v308 = vadd.f32 %v272, %v303
  %v309 = vadd.f32 %v273, %v304
  %v310 = vadd.f32 %v274, %v302
  %311 = vset.pattern.permute.xlu0 28
  %312 = vperm.xlu0 %311, %v111
  %v313 = vpop.permute.xlu0 %312
  %v315 = vlaneseq
  %v316 = vshrl.u32 %v315, 7
  %v317 = vsub.s32 3, %v316
  %v318 = vrot.slane %v22, %v317
  %v319 = vlaneseq
  %v320 = vshrl.u32 %v319, 7
  %v321 = vsub.s32 3, %v320
  %v322 = vrot.slane %v23, %v321
  %v323 = vlaneseq
  %v324 = vshrl.u32 %v323, 7
  %v325 = vsub.s32 3, %v324
  %v326 = vrot.slane %v24, %v325
  %v327 = vmul.f32 %v313, %v318
  %v328 = vmul.f32 %v313, %v322
  %v329 = vmul.f32 %v313, %v326
  %333 = vrot.lane.b32.xlu0 %v327, 127
  %v334 = vpop.permute.xlu0 %333
  %335 = vrot.lane.b32.xlu0 %v328, 127
  %v336 = vpop.permute.xlu0 %335
  %337 = vrot.lane.b32.xlu0 %v329, 127
  %v338 = vpop.permute.xlu0 %337
  %v339 = vsel %vm230, %v334, %v336
  %v340 = vsel %vm230, %v336, %v338
  %v344 = vadd.f32 %v308, %v339
  %v345 = vadd.f32 %v309, %v340
  %v346 = vadd.f32 %v310, %v338
  %347 = vset.pattern.permute.xlu0 2
  %348 = vperm.xlu0 %347, %v111
  %v349 = vpop.permute.xlu0 %348
  %v351 = vlaneseq
  %v352 = vshrl.u32 %v351, 7
  %v353 = vsub.s32 0, %v352
  %v354 = vrot.slane %v107, %v353
  %v355 = vlaneseq
  %v356 = vshrl.u32 %v355, 7
  %v357 = vsub.s32 0, %v356
  %v358 = vrot.slane %v108, %v357
  %v359 = vlaneseq
  %v360 = vshrl.u32 %v359, 7
  %v361 = vsub.s32 0, %v360
  %v362 = vrot.slane %v109, %v361
  %v363 = vmul.f32 %v349, %v354
  %v364 = vmul.f32 %v349, %v358
  %v365 = vmul.f32 %v349, %v362
  %369 = vrot.lane.b32.xlu0 %v363, 126
  %v370 = vpop.permute.xlu0 %369
  %371 = vrot.lane.b32.xlu0 %v364, 126
  %v372 = vpop.permute.xlu0 %371
  %373 = vrot.lane.b32.xlu0 %v365, 126
  %v374 = vpop.permute.xlu0 %373
  %vm375 = vcmask 1031168
  %v376 = vsel %vm375, %v370, %v372
  %v377 = vsel %vm375, %v372, %v374
  %v381 = vadd.f32 %v344, %v376
  %v382 = vadd.f32 %v345, %v377
  %v383 = vadd.f32 %v346, %v374
  %384 = vset.pattern.permute.xlu0 11
  %385 = vperm.xlu0 %384, %v111
  %v386 = vpop.permute.xlu0 %385
  %v388 = vlaneseq
  %v389 = vshrl.u32 %v388, 7
  %v390 = vsub.s32 1, %v389
  %v391 = vrot.slane %v107, %v390
  %v392 = vlaneseq
  %v393 = vshrl.u32 %v392, 7
  %v394 = vsub.s32 1, %v393
  %v395 = vrot.slane %v108, %v394
  %v396 = vlaneseq
  %v397 = vshrl.u32 %v396, 7
  %v398 = vsub.s32 1, %v397
  %v399 = vrot.slane %v109, %v398
  %v400 = vmul.f32 %v386, %v391
  %v401 = vmul.f32 %v386, %v395
  %v402 = vmul.f32 %v386, %v399
  %406 = vrot.lane.b32.xlu0 %v400, 126
  %v407 = vpop.permute.xlu0 %406
  %408 = vrot.lane.b32.xlu0 %v401, 126
  %v409 = vpop.permute.xlu0 %408
  %410 = vrot.lane.b32.xlu0 %v402, 126
  %v411 = vpop.permute.xlu0 %410
  %v412 = vsel %vm375, %v407, %v409
  %v413 = vsel %vm375, %v409, %v411
  %v417 = vadd.f32 %v381, %v412
  %v418 = vadd.f32 %v382, %v413
  %v419 = vadd.f32 %v383, %v411
  %420 = vset.pattern.permute.xlu0 20
  %421 = vperm.xlu0 %420, %v111
  %v422 = vpop.permute.xlu0 %421
  %v424 = vlaneseq
  %v425 = vshrl.u32 %v424, 7
  %v426 = vsub.s32 2, %v425
  %v427 = vrot.slane %v107, %v426
  %v428 = vlaneseq
  %v429 = vshrl.u32 %v428, 7
  %v430 = vsub.s32 2, %v429
  %v431 = vrot.slane %v108, %v430
  %v432 = vlaneseq
  %v433 = vshrl.u32 %v432, 7
  %v434 = vsub.s32 2, %v433
  %v435 = vrot.slane %v109, %v434
  %v436 = vmul.f32 %v422, %v427
  %v437 = vmul.f32 %v422, %v431
  %v438 = vmul.f32 %v422, %v435
  %442 = vrot.lane.b32.xlu0 %v436, 126
  %v443 = vpop.permute.xlu0 %442
  %444 = vrot.lane.b32.xlu0 %v437, 126
  %v445 = vpop.permute.xlu0 %444
  %446 = vrot.lane.b32.xlu0 %v438, 126
  %v447 = vpop.permute.xlu0 %446
  %v448 = vsel %vm375, %v443, %v445
  %v449 = vsel %vm375, %v445, %v447
  %v453 = vadd.f32 %v417, %v448
  %v454 = vadd.f32 %v418, %v449
  %v455 = vadd.f32 %v419, %v447
  %456 = vset.pattern.permute.xlu0 29
  %457 = vperm.xlu0 %456, %v111
  %v458 = vpop.permute.xlu0 %457
  %v460 = vlaneseq
  %v461 = vshrl.u32 %v460, 7
  %v462 = vsub.s32 3, %v461
  %v463 = vrot.slane %v107, %v462
  %v464 = vlaneseq
  %v465 = vshrl.u32 %v464, 7
  %v466 = vsub.s32 3, %v465
  %v467 = vrot.slane %v108, %v466
  %v468 = vlaneseq
  %v469 = vshrl.u32 %v468, 7
  %v470 = vsub.s32 3, %v469
  %v471 = vrot.slane %v109, %v470
  %v472 = vmul.f32 %v458, %v463
  %v473 = vmul.f32 %v458, %v467
  %v474 = vmul.f32 %v458, %v471
  %478 = vrot.lane.b32.xlu0 %v472, 126
  %v479 = vpop.permute.xlu0 %478
  %480 = vrot.lane.b32.xlu0 %v473, 126
  %v481 = vpop.permute.xlu0 %480
  %482 = vrot.lane.b32.xlu0 %v474, 126
  %v483 = vpop.permute.xlu0 %482
  %v484 = vsel %vm375, %v479, %v481
  %v485 = vsel %vm375, %v481, %v483
  %v489 = vadd.f32 %v453, %v484
  %v490 = vadd.f32 %v454, %v485
  %v491 = vadd.f32 %v455, %v483
  %492 = vset.pattern.permute.xlu0 3
  %493 = vperm.xlu0 %492, %v111
  %v494 = vpop.permute.xlu0 %493
  %v496 = vmul.f32 %v494, %v121
  %v497 = vmul.f32 %v494, %v125
  %v498 = vmul.f32 %v494, %v129
  %v499 = vadd.f32 %v496, 0.0
  %v500 = vadd.f32 %v497, 0.0
  %v501 = vadd.f32 %v498, 0.0
  %502 = vset.pattern.permute.xlu0 12
  %503 = vperm.xlu0 %502, %v111
  %v504 = vpop.permute.xlu0 %503
  %v506 = vmul.f32 %v504, %v143
  %v507 = vmul.f32 %v504, %v147
  %v508 = vmul.f32 %v504, %v151
  %v509 = vadd.f32 %v499, %v506
  %v510 = vadd.f32 %v500, %v507
  %v511 = vadd.f32 %v501, %v508
  %512 = vset.pattern.permute.xlu0 21
  %513 = vperm.xlu0 %512, %v111
  %v514 = vpop.permute.xlu0 %513
  %v516 = vmul.f32 %v514, %v165
  %v517 = vmul.f32 %v514, %v169
  %v518 = vmul.f32 %v514, %v173
  %v519 = vadd.f32 %v509, %v516
  %v520 = vadd.f32 %v510, %v517
  %v521 = vadd.f32 %v511, %v518
  %522 = vset.pattern.permute.xlu0 30
  %523 = vperm.xlu0 %522, %v111
  %v524 = vpop.permute.xlu0 %523
  %v526 = vmul.f32 %v524, %v187
  %v527 = vmul.f32 %v524, %v191
  %v528 = vmul.f32 %v524, %v195
  %v529 = vadd.f32 %v519, %v526
  %v530 = vadd.f32 %v520, %v527
  %v531 = vadd.f32 %v521, %v528
  %532 = vset.pattern.permute.xlu0 4
  %533 = vperm.xlu0 %532, %v111
  %v534 = vpop.permute.xlu0 %533
  %v536 = vmul.f32 %v534, %v213
  %v537 = vmul.f32 %v534, %v217
  %540 = vrot.lane.b32.xlu0 %v536, 127
  %v541 = vpop.permute.xlu0 %540
  %542 = vrot.lane.b32.xlu0 %v537, 127
  %v543 = vpop.permute.xlu0 %542
  %v544 = vsel %vm230, %v541, %v543
  %v548 = vadd.f32 %v529, %v541
  %v549 = vadd.f32 %v530, %v544
  %v550 = vadd.f32 %v531, %v543
  %551 = vset.pattern.permute.xlu0 13
  %552 = vperm.xlu0 %551, %v111
  %v553 = vpop.permute.xlu0 %552
  %v555 = vmul.f32 %v553, %v250
  %v556 = vmul.f32 %v553, %v254
  %559 = vrot.lane.b32.xlu0 %v555, 127
  %v560 = vpop.permute.xlu0 %559
  %561 = vrot.lane.b32.xlu0 %v556, 127
  %v562 = vpop.permute.xlu0 %561
  %v563 = vsel %vm230, %v560, %v562
  %v567 = vadd.f32 %v548, %v560
  %v568 = vadd.f32 %v549, %v563
  %v569 = vadd.f32 %v550, %v562
  %570 = vset.pattern.permute.xlu0 22
  %571 = vperm.xlu0 %570, %v111
  %v572 = vpop.permute.xlu0 %571
  %v574 = vmul.f32 %v572, %v286
  %v575 = vmul.f32 %v572, %v290
  %578 = vrot.lane.b32.xlu0 %v574, 127
  %v579 = vpop.permute.xlu0 %578
  %580 = vrot.lane.b32.xlu0 %v575, 127
  %v581 = vpop.permute.xlu0 %580
  %v582 = vsel %vm230, %v579, %v581
  %v586 = vadd.f32 %v567, %v579
  %v587 = vadd.f32 %v568, %v582
  %v588 = vadd.f32 %v569, %v581
  %589 = vset.pattern.permute.xlu0 31
  %590 = vperm.xlu0 %589, %v111
  %v591 = vpop.permute.xlu0 %590
  %v593 = vmul.f32 %v591, %v322
  %v594 = vmul.f32 %v591, %v326
  %597 = vrot.lane.b32.xlu0 %v593, 127
  %v598 = vpop.permute.xlu0 %597
  %599 = vrot.lane.b32.xlu0 %v594, 127
  %v600 = vpop.permute.xlu0 %599
  %v601 = vsel %vm230, %v598, %v600
  %v605 = vadd.f32 %v586, %v598
  %v606 = vadd.f32 %v587, %v601
  %v607 = vadd.f32 %v588, %v600
  %608 = vset.pattern.permute.xlu0 5
  %609 = vperm.xlu0 %608, %v111
  %v610 = vpop.permute.xlu0 %609
  %v612 = vlaneseq
  %v613 = vshrl.u32 %v612, 7
  %v614 = vsub.s32 0, %v613
  %v615 = vrot.slane %v110, %v614
  %v616 = vmul.f32 %v610, %v358
  %v617 = vmul.f32 %v610, %v362
  %v618 = vmul.f32 %v610, %v615
  %622 = vrot.lane.b32.xlu0 %v616, 126
  %v623 = vpop.permute.xlu0 %622
  %624 = vrot.lane.b32.xlu0 %v617, 126
  %v625 = vpop.permute.xlu0 %624
  %626 = vrot.lane.b32.xlu0 %v618, 126
  %v627 = vpop.permute.xlu0 %626
  %v628 = vsel %vm375, %v623, %v625
  %v629 = vsel %vm375, %v625, %v627
  %v633 = vadd.f32 %v605, %v623
  %v634 = vadd.f32 %v606, %v628
  %v635 = vadd.f32 %v607, %v629
  %636 = vset.pattern.permute.xlu0 14
  %637 = vperm.xlu0 %636, %v111
  %v638 = vpop.permute.xlu0 %637
  %v640 = vlaneseq
  %v641 = vshrl.u32 %v640, 7
  %v642 = vsub.s32 1, %v641
  %v643 = vrot.slane %v110, %v642
  %v644 = vmul.f32 %v638, %v395
  %v645 = vmul.f32 %v638, %v399
  %v646 = vmul.f32 %v638, %v643
  %650 = vrot.lane.b32.xlu0 %v644, 126
  %v651 = vpop.permute.xlu0 %650
  %652 = vrot.lane.b32.xlu0 %v645, 126
  %v653 = vpop.permute.xlu0 %652
  %654 = vrot.lane.b32.xlu0 %v646, 126
  %v655 = vpop.permute.xlu0 %654
  %v656 = vsel %vm375, %v651, %v653
  %v657 = vsel %vm375, %v653, %v655
  %v661 = vadd.f32 %v633, %v651
  %v662 = vadd.f32 %v634, %v656
  %v663 = vadd.f32 %v635, %v657
  %664 = vset.pattern.permute.xlu0 23
  %665 = vperm.xlu0 %664, %v111
  %v666 = vpop.permute.xlu0 %665
  %v668 = vlaneseq
  %v669 = vshrl.u32 %v668, 7
  %v670 = vsub.s32 2, %v669
  %v671 = vrot.slane %v110, %v670
  %v672 = vmul.f32 %v666, %v431
  %v673 = vmul.f32 %v666, %v435
  %v674 = vmul.f32 %v666, %v671
  %678 = vrot.lane.b32.xlu0 %v672, 126
  %v679 = vpop.permute.xlu0 %678
  %680 = vrot.lane.b32.xlu0 %v673, 126
  %v681 = vpop.permute.xlu0 %680
  %682 = vrot.lane.b32.xlu0 %v674, 126
  %v683 = vpop.permute.xlu0 %682
  %v684 = vsel %vm375, %v679, %v681
  %v685 = vsel %vm375, %v681, %v683
  %v689 = vadd.f32 %v661, %v679
  %v690 = vadd.f32 %v662, %v684
  %v691 = vadd.f32 %v663, %v685
  %692 = vset.pattern.permute.xlu0 32
  %693 = vperm.xlu0 %692, %v111
  %v694 = vpop.permute.xlu0 %693
  %v696 = vlaneseq
  %v697 = vshrl.u32 %v696, 7
  %v698 = vsub.s32 3, %v697
  %v699 = vrot.slane %v110, %v698
  %v700 = vmul.f32 %v694, %v467
  %v701 = vmul.f32 %v694, %v471
  %v702 = vmul.f32 %v694, %v699
  %706 = vrot.lane.b32.xlu0 %v700, 126
  %v707 = vpop.permute.xlu0 %706
  %708 = vrot.lane.b32.xlu0 %v701, 126
  %v709 = vpop.permute.xlu0 %708
  %710 = vrot.lane.b32.xlu0 %v702, 126
  %v711 = vpop.permute.xlu0 %710
  %v712 = vsel %vm375, %v707, %v709
  %v713 = vsel %vm375, %v709, %v711
  %v717 = vadd.f32 %v689, %v707
  %v718 = vadd.f32 %v690, %v712
  %v719 = vadd.f32 %v691, %v713
  %720 = vset.pattern.permute.xlu0 6
  %721 = vperm.xlu0 %720, %v111
  %v722 = vpop.permute.xlu0 %721
  %v724 = vlaneseq
  %v725 = vshrl.u32 %v724, 7
  %v726 = vsub.s32 0, %v725
  %v727 = vrot.slane %v94, %v726
  %v728 = vmul.f32 %v722, %v125
  %v729 = vmul.f32 %v722, %v129
  %v730 = vmul.f32 %v722, %v727
  %v731 = vadd.f32 %v728, 0.0
  %v732 = vadd.f32 %v729, 0.0
  %v733 = vadd.f32 %v730, 0.0
  %734 = vset.pattern.permute.xlu0 15
  %735 = vperm.xlu0 %734, %v111
  %v736 = vpop.permute.xlu0 %735
  %v738 = vlaneseq
  %v739 = vshrl.u32 %v738, 7
  %v740 = vsub.s32 1, %v739
  %v741 = vrot.slane %v94, %v740
  %v742 = vmul.f32 %v736, %v147
  %v743 = vmul.f32 %v736, %v151
  %v744 = vmul.f32 %v736, %v741
  %v745 = vadd.f32 %v731, %v742
  %v746 = vadd.f32 %v732, %v743
  %v747 = vadd.f32 %v733, %v744
  %748 = vset.pattern.permute.xlu0 24
  %749 = vperm.xlu0 %748, %v111
  %v750 = vpop.permute.xlu0 %749
  %v752 = vlaneseq
  %v753 = vshrl.u32 %v752, 7
  %v754 = vsub.s32 2, %v753
  %v755 = vrot.slane %v94, %v754
  %v756 = vmul.f32 %v750, %v169
  %v757 = vmul.f32 %v750, %v173
  %v758 = vmul.f32 %v750, %v755
  %v759 = vadd.f32 %v745, %v756
  %v760 = vadd.f32 %v746, %v757
  %v761 = vadd.f32 %v747, %v758
  %762 = vset.pattern.permute.xlu0 33
  %763 = vperm.xlu0 %762, %v111
  %v764 = vpop.permute.xlu0 %763
  %v766 = vlaneseq
  %v767 = vshrl.u32 %v766, 7
  %v768 = vsub.s32 3, %v767
  %v769 = vrot.slane %v94, %v768
  %v770 = vmul.f32 %v764, %v191
  %v771 = vmul.f32 %v764, %v195
  %v772 = vmul.f32 %v764, %v769
  %v773 = vadd.f32 %v759, %v770
  %v774 = vadd.f32 %v760, %v771
  %v775 = vadd.f32 %v761, %v772
  %776 = vset.pattern.permute.xlu0 7
  %777 = vperm.xlu0 %776, %v111
  %v778 = vpop.permute.xlu0 %777
  %v780 = vlaneseq
  %v781 = vshrl.u32 %v780, 7
  %v782 = vsub.s32 0, %v781
  %v783 = vrot.slane %v25, %v782
  %v784 = vmul.f32 %v778, %v213
  %v785 = vmul.f32 %v778, %v217
  %v786 = vmul.f32 %v778, %v783
  %790 = vrot.lane.b32.xlu0 %v784, 127
  %v791 = vpop.permute.xlu0 %790
  %792 = vrot.lane.b32.xlu0 %v785, 127
  %v793 = vpop.permute.xlu0 %792
  %794 = vrot.lane.b32.xlu0 %v786, 127
  %v795 = vpop.permute.xlu0 %794
  %v796 = vsel %vm230, %v791, %v793
  %v797 = vsel %vm230, %v793, %v795
  %v801 = vadd.f32 %v773, %v796
  %v802 = vadd.f32 %v774, %v797
  %v803 = vadd.f32 %v775, %v795
  %804 = vset.pattern.permute.xlu0 16
  %805 = vperm.xlu0 %804, %v111
  %v806 = vpop.permute.xlu0 %805
  %v808 = vlaneseq
  %v809 = vshrl.u32 %v808, 7
  %v810 = vsub.s32 1, %v809
  %v811 = vrot.slane %v25, %v810
  %v812 = vmul.f32 %v806, %v250
  %v813 = vmul.f32 %v806, %v254
  %v814 = vmul.f32 %v806, %v811
  %818 = vrot.lane.b32.xlu0 %v812, 127
  %v819 = vpop.permute.xlu0 %818
  %820 = vrot.lane.b32.xlu0 %v813, 127
  %v821 = vpop.permute.xlu0 %820
  %822 = vrot.lane.b32.xlu0 %v814, 127
  %v823 = vpop.permute.xlu0 %822
  %v824 = vsel %vm230, %v819, %v821
  %v825 = vsel %vm230, %v821, %v823
  %v829 = vadd.f32 %v801, %v824
  %v830 = vadd.f32 %v802, %v825
  %v831 = vadd.f32 %v803, %v823
  %832 = vset.pattern.permute.xlu0 25
  %833 = vperm.xlu0 %832, %v111
  %v834 = vpop.permute.xlu0 %833
  %v836 = vlaneseq
  %v837 = vshrl.u32 %v836, 7
  %v838 = vsub.s32 2, %v837
  %v839 = vrot.slane %v25, %v838
  %v840 = vmul.f32 %v834, %v286
  %v841 = vmul.f32 %v834, %v290
  %v842 = vmul.f32 %v834, %v839
  %846 = vrot.lane.b32.xlu0 %v840, 127
  %v847 = vpop.permute.xlu0 %846
  %848 = vrot.lane.b32.xlu0 %v841, 127
  %v849 = vpop.permute.xlu0 %848
  %850 = vrot.lane.b32.xlu0 %v842, 127
  %v851 = vpop.permute.xlu0 %850
  %v852 = vsel %vm230, %v847, %v849
  %v853 = vsel %vm230, %v849, %v851
  %v857 = vadd.f32 %v829, %v852
  %v858 = vadd.f32 %v830, %v853
  %v859 = vadd.f32 %v831, %v851
  %860 = vset.pattern.permute.xlu0 34
  %861 = vperm.xlu0 %860, %v111
  %v862 = vpop.permute.xlu0 %861
  %v864 = vlaneseq
  %v865 = vshrl.u32 %v864, 7
  %v866 = vsub.s32 3, %v865
  %v867 = vrot.slane %v25, %v866
  %v868 = vmul.f32 %v862, %v322
  %v869 = vmul.f32 %v862, %v326
  %v870 = vmul.f32 %v862, %v867
  %874 = vrot.lane.b32.xlu0 %v868, 127
  %v875 = vpop.permute.xlu0 %874
  %876 = vrot.lane.b32.xlu0 %v869, 127
  %v877 = vpop.permute.xlu0 %876
  %878 = vrot.lane.b32.xlu0 %v870, 127
  %v879 = vpop.permute.xlu0 %878
  %v880 = vsel %vm230, %v875, %v877
  %v881 = vsel %vm230, %v877, %v879
  %v885 = vadd.f32 %v857, %v880
  %v886 = vadd.f32 %v858, %v881
  %v887 = vadd.f32 %v859, %v879
  %888 = vset.pattern.permute.xlu0 8
  %889 = vperm.xlu0 %888, %v111
  %v890 = vpop.permute.xlu0 %889
  %v892 = vmul.f32 %v890, %v358
  %v893 = vmul.f32 %v890, %v362
  %v894 = vmul.f32 %v890, %v615
  %898 = vrot.lane.b32.xlu0 %v892, 126
  %v899 = vpop.permute.xlu0 %898
  %900 = vrot.lane.b32.xlu0 %v893, 126
  %v901 = vpop.permute.xlu0 %900
  %902 = vrot.lane.b32.xlu0 %v894, 126
  %v903 = vpop.permute.xlu0 %902
  %v904 = vsel %vm375, %v899, %v901
  %v905 = vsel %vm375, %v901, %v903
  %v909 = vadd.f32 %v885, %v904
  %v910 = vadd.f32 %v886, %v905
  %v911 = vadd.f32 %v887, %v903
  %912 = vset.pattern.permute.xlu0 17
  %913 = vperm.xlu0 %912, %v111
  %v914 = vpop.permute.xlu0 %913
  %v916 = vmul.f32 %v914, %v395
  %v917 = vmul.f32 %v914, %v399
  %v918 = vmul.f32 %v914, %v643
  %922 = vrot.lane.b32.xlu0 %v916, 126
  %v923 = vpop.permute.xlu0 %922
  %924 = vrot.lane.b32.xlu0 %v917, 126
  %v925 = vpop.permute.xlu0 %924
  %926 = vrot.lane.b32.xlu0 %v918, 126
  %v927 = vpop.permute.xlu0 %926
  %v928 = vsel %vm375, %v923, %v925
  %v929 = vsel %vm375, %v925, %v927
  %v933 = vadd.f32 %v909, %v928
  %v934 = vadd.f32 %v910, %v929
  %v935 = vadd.f32 %v911, %v927
  %936 = vset.pattern.permute.xlu0 26
  %937 = vperm.xlu0 %936, %v111
  %v938 = vpop.permute.xlu0 %937
  %v940 = vmul.f32 %v938, %v431
  %v941 = vmul.f32 %v938, %v435
  %v942 = vmul.f32 %v938, %v671
  %946 = vrot.lane.b32.xlu0 %v940, 126
  %v947 = vpop.permute.xlu0 %946
  %948 = vrot.lane.b32.xlu0 %v941, 126
  %v949 = vpop.permute.xlu0 %948
  %950 = vrot.lane.b32.xlu0 %v942, 126
  %v951 = vpop.permute.xlu0 %950
  %v952 = vsel %vm375, %v947, %v949
  %v953 = vsel %vm375, %v949, %v951
  %v957 = vadd.f32 %v933, %v952
  %v958 = vadd.f32 %v934, %v953
  %v959 = vadd.f32 %v935, %v951
  %960 = vset.pattern.permute.xlu0 35
  %961 = vperm.xlu0 %960, %v111
  %v962 = vpop.permute.xlu0 %961
  %v964 = vmul.f32 %v962, %v467
  %v965 = vmul.f32 %v962, %v471
  %v966 = vmul.f32 %v962, %v699
  %970 = vrot.lane.b32.xlu0 %v964, 126
  %v971 = vpop.permute.xlu0 %970
  %972 = vrot.lane.b32.xlu0 %v965, 126
  %v973 = vpop.permute.xlu0 %972
  %974 = vrot.lane.b32.xlu0 %v966, 126
  %v975 = vpop.permute.xlu0 %974
  %v976 = vsel %vm375, %v971, %v973
  %v977 = vsel %vm375, %v973, %v975
  %v981 = vadd.f32 %v957, %v976
  %v982 = vadd.f32 %v958, %v977
  %v983 = vadd.f32 %v959, %v975
  %987 = vrot.lane.b32.xlu0 %v717, 112
  %v988 = vpop.permute.xlu0 %987
  %989 = vrot.lane.b32.xlu0 %v718, 112
  %v990 = vpop.permute.xlu0 %989
  %991 = vrot.lane.b32.xlu0 %v719, 112
  %v992 = vpop.permute.xlu0 %991
  %vm993 = vcmask 916480
  %v994 = vsel %vm993, %v988, %v990
  %v995 = vsel %vm993, %v990, %v992
  %v999 = vadd.f32 %v489, %v994
  %v1000 = vadd.f32 %v490, %v995
  %v1001 = vadd.f32 %v491, %v992
  %1005 = vrot.lane.b32.xlu0 %v981, 96
  %v1006 = vpop.permute.xlu0 %1005
  %1007 = vrot.lane.b32.xlu0 %v982, 96
  %v1008 = vpop.permute.xlu0 %1007
  %1009 = vrot.lane.b32.xlu0 %v983, 96
  %v1010 = vpop.permute.xlu0 %1009
  %vm1011 = vcmask 785408
  %v1012 = vsel %vm1011, %v1006, %v1008
  %v1013 = vsel %vm1011, %v1008, %v1010
  %v1017 = vadd.f32 %v999, %v1006
  %v1018 = vadd.f32 %v1000, %v1012
  %v1019 = vadd.f32 %v1001, %v1013
  %1021 = vset.pattern.permute.xlu0 0
  %1022 = vperm.xlu0 %1021, %v112
  %v1023 = vpop.permute.xlu0 %1022
  %v1025 = vadd.f32 %v1017, %v1023
  %v1026 = vadd.f32 %v1018, %v1023
  %v1027 = vadd.f32 %v1019, %v1023
  %1030 = vrot.lane.b32.xlu0 %v23, 111
  %v1031 = vpop.permute.xlu0 %1030
  %1032 = vrot.lane.b32.xlu0 %v24, 111
  %v1033 = vpop.permute.xlu0 %1032
  %vm1034 = vcmask 908288
  %v1035 = vsel %vm1034, %v1031, %v1033
  %v1039 = vadd.f32 %v1025, %v1031
  %v1040 = vadd.f32 %v1026, %v1035
  %v1041 = vadd.f32 %v1027, %v1033
  %1045 = vrot.lane.b32.xlu0 %v1039, 17
  %v1046 = vpop.permute.xlu0 %1045
  %1047 = vrot.lane.b32.xlu0 %v1040, 17
  %v1048 = vpop.permute.xlu0 %1047
  %1049 = vrot.lane.b32.xlu0 %v1041, 17
  %v1050 = vpop.permute.xlu0 %1049
  %vm1051 = vcmask 138240
  %v1052 = vsel %vm1051, %v1046, %v1048
  %v1053 = vsel %vm1051, %v1048, %v1050
  %1056 = vst [vmem:[%s3] sm:$0xf] %v1052
  %1057 = vst [vmem:[%s3 + $0x8] sm:$0xf] %v1053
  %vm1058 = vcmask 1043456
  %v1059 = vsel %vm1058, %v1052, 0.0
  %v1060 = vsel %vm1058, %v1053, 0.0
  %v1061 = vadd.f32 %v1059, %v1060
  %1062 = vadd.xlane.f32.xlu0 %v1061
  %v1063 = vpop.xlane.xlu0 %1062
  %v1064 = vmul.f32 %v1063, 0.00390625
  %v1065 = vsub.f32 %v1039, %v1064
  %v1066 = vsub.f32 %v1040, %v1064
  %v1067 = vsub.f32 %v1041, %v1064
  %vm1068 = vcmask 3072
  %1069 = vst.msk [vmem:[%s4] sm:$0xf] %vm1068, %v1064
  %v1070 = vmul.f32 %v1065, %v1065
  %v1071 = vmul.f32 %v1066, %v1066
  %v1072 = vmul.f32 %v1067, %v1067
  %1076 = vrot.lane.b32.xlu0 %v1070, 17
  %v1077 = vpop.permute.xlu0 %1076
  %1078 = vrot.lane.b32.xlu0 %v1071, 17
  %v1079 = vpop.permute.xlu0 %1078
  %1080 = vrot.lane.b32.xlu0 %v1072, 17
  %v1081 = vpop.permute.xlu0 %1080
  %v1082 = vsel %vm1051, %v1077, %v1079
  %v1083 = vsel %vm1051, %v1079, %v1081
  %v1086 = vsel %vm1058, %v1082, 0.0
  %v1087 = vsel %vm1058, %v1083, 0.0
  %v1088 = vadd.f32 %v1086, %v1087
  %1089 = vadd.xlane.f32.xlu0 %v1088
  %v1090 = vpop.xlane.xlu0 %1089
  %vm1091 = vcmask 11272
  %1092 = vst.msk [vmem:[%s4] sm:$0xf] %vm1091, %v1090
  %v1093 = vlaneseq
  %v1094 = vshrl.u32 %v1093, 7
  %v1095 = vsub.s32 4, %v1094
  %v1096 = vrot.slane %v91, %v1095
  %v1097 = vlaneseq
  %v1098 = vshrl.u32 %v1097, 7
  %v1099 = vsub.s32 4, %v1098
  %v1100 = vrot.slane %v92, %v1099
  %v1101 = vlaneseq
  %v1102 = vshrl.u32 %v1101, 7
  %v1103 = vsub.s32 4, %v1102
  %v1104 = vrot.slane %v93, %v1103
  %v1105 = vmul.f32 %v116, %v1096
  %v1106 = vmul.f32 %v116, %v1100
  %v1107 = vmul.f32 %v116, %v1104
  %v1108 = vadd.f32 %v1105, 0.0
  %v1109 = vadd.f32 %v1106, 0.0
  %v1110 = vadd.f32 %v1107, 0.0
  %v1111 = vlaneseq
  %v1112 = vshrl.u32 %v1111, 7
  %v1113 = vsub.s32 5, %v1112
  %v1114 = vrot.slane %v91, %v1113
  %v1115 = vlaneseq
  %v1116 = vshrl.u32 %v1115, 7
  %v1117 = vsub.s32 5, %v1116
  %v1118 = vrot.slane %v92, %v1117
  %v1119 = vlaneseq
  %v1120 = vshrl.u32 %v1119, 7
  %v1121 = vsub.s32 5, %v1120
  %v1122 = vrot.slane %v93, %v1121
  %v1123 = vmul.f32 %v138, %v1114
  %v1124 = vmul.f32 %v138, %v1118
  %v1125 = vmul.f32 %v138, %v1122
  %v1126 = vadd.f32 %v1108, %v1123
  %v1127 = vadd.f32 %v1109, %v1124
  %v1128 = vadd.f32 %v1110, %v1125
  %v1129 = vlaneseq
  %v1130 = vshrl.u32 %v1129, 7
  %v1131 = vsub.s32 6, %v1130
  %v1132 = vrot.slane %v91, %v1131
  %v1133 = vlaneseq
  %v1134 = vshrl.u32 %v1133, 7
  %v1135 = vsub.s32 6, %v1134
  %v1136 = vrot.slane %v92, %v1135
  %v1137 = vlaneseq
  %v1138 = vshrl.u32 %v1137, 7
  %v1139 = vsub.s32 6, %v1138
  %v1140 = vrot.slane %v93, %v1139
  %v1141 = vmul.f32 %v160, %v1132
  %v1142 = vmul.f32 %v160, %v1136
  %v1143 = vmul.f32 %v160, %v1140
  %v1144 = vadd.f32 %v1126, %v1141
  %v1145 = vadd.f32 %v1127, %v1142
  %v1146 = vadd.f32 %v1128, %v1143
  %v1147 = vlaneseq
  %v1148 = vshrl.u32 %v1147, 7
  %v1149 = vsub.s32 7, %v1148
  %v1150 = vrot.slane %v91, %v1149
  %v1151 = vlaneseq
  %v1152 = vshrl.u32 %v1151, 7
  %v1153 = vsub.s32 7, %v1152
  %v1154 = vrot.slane %v92, %v1153
  %v1155 = vlaneseq
  %v1156 = vshrl.u32 %v1155, 7
  %v1157 = vsub.s32 7, %v1156
  %v1158 = vrot.slane %v93, %v1157
  %v1159 = vmul.f32 %v182, %v1150
  %v1160 = vmul.f32 %v182, %v1154
  %v1161 = vmul.f32 %v182, %v1158
  %v1162 = vadd.f32 %v1144, %v1159
  %v1163 = vadd.f32 %v1145, %v1160
  %v1164 = vadd.f32 %v1146, %v1161
  %v1165 = vlaneseq
  %v1166 = vshrl.u32 %v1165, 7
  %v1167 = vsub.s32 4, %v1166
  %v1168 = vrot.slane %v22, %v1167
  %v1169 = vlaneseq
  %v1170 = vshrl.u32 %v1169, 7
  %v1171 = vsub.s32 4, %v1170
  %v1172 = vrot.slane %v23, %v1171
  %v1173 = vlaneseq
  %v1174 = vshrl.u32 %v1173, 7
  %v1175 = vsub.s32 4, %v1174
  %v1176 = vrot.slane %v24, %v1175
  %v1177 = vmul.f32 %v204, %v1168
  %v1178 = vmul.f32 %v204, %v1172
  %v1179 = vmul.f32 %v204, %v1176
  %1183 = vrot.lane.b32.xlu0 %v1177, 127
  %v1184 = vpop.permute.xlu0 %1183
  %1185 = vrot.lane.b32.xlu0 %v1178, 127
  %v1186 = vpop.permute.xlu0 %1185
  %1187 = vrot.lane.b32.xlu0 %v1179, 127
  %v1188 = vpop.permute.xlu0 %1187
  %v1189 = vsel %vm230, %v1184, %v1186
  %v1190 = vsel %vm230, %v1186, %v1188
  %v1194 = vadd.f32 %v1162, %v1189
  %v1195 = vadd.f32 %v1163, %v1190
  %v1196 = vadd.f32 %v1164, %v1188
  %v1197 = vlaneseq
  %v1198 = vshrl.u32 %v1197, 7
  %v1199 = vsub.s32 5, %v1198
  %v1200 = vrot.slane %v22, %v1199
  %v1201 = vlaneseq
  %v1202 = vshrl.u32 %v1201, 7
  %v1203 = vsub.s32 5, %v1202
  %v1204 = vrot.slane %v23, %v1203
  %v1205 = vlaneseq
  %v1206 = vshrl.u32 %v1205, 7
  %v1207 = vsub.s32 5, %v1206
  %v1208 = vrot.slane %v24, %v1207
  %v1209 = vmul.f32 %v241, %v1200
  %v1210 = vmul.f32 %v241, %v1204
  %v1211 = vmul.f32 %v241, %v1208
  %1215 = vrot.lane.b32.xlu0 %v1209, 127
  %v1216 = vpop.permute.xlu0 %1215
  %1217 = vrot.lane.b32.xlu0 %v1210, 127
  %v1218 = vpop.permute.xlu0 %1217
  %1219 = vrot.lane.b32.xlu0 %v1211, 127
  %v1220 = vpop.permute.xlu0 %1219
  %v1221 = vsel %vm230, %v1216, %v1218
  %v1222 = vsel %vm230, %v1218, %v1220
  %v1226 = vadd.f32 %v1194, %v1221
  %v1227 = vadd.f32 %v1195, %v1222
  %v1228 = vadd.f32 %v1196, %v1220
  %v1229 = vlaneseq
  %v1230 = vshrl.u32 %v1229, 7
  %v1231 = vsub.s32 6, %v1230
  %v1232 = vrot.slane %v22, %v1231
  %v1233 = vlaneseq
  %v1234 = vshrl.u32 %v1233, 7
  %v1235 = vsub.s32 6, %v1234
  %v1236 = vrot.slane %v23, %v1235
  %v1237 = vlaneseq
  %v1238 = vshrl.u32 %v1237, 7
  %v1239 = vsub.s32 6, %v1238
  %v1240 = vrot.slane %v24, %v1239
  %v1241 = vmul.f32 %v277, %v1232
  %v1242 = vmul.f32 %v277, %v1236
  %v1243 = vmul.f32 %v277, %v1240
  %1247 = vrot.lane.b32.xlu0 %v1241, 127
  %v1248 = vpop.permute.xlu0 %1247
  %1249 = vrot.lane.b32.xlu0 %v1242, 127
  %v1250 = vpop.permute.xlu0 %1249
  %1251 = vrot.lane.b32.xlu0 %v1243, 127
  %v1252 = vpop.permute.xlu0 %1251
  %v1253 = vsel %vm230, %v1248, %v1250
  %v1254 = vsel %vm230, %v1250, %v1252
  %v1258 = vadd.f32 %v1226, %v1253
  %v1259 = vadd.f32 %v1227, %v1254
  %v1260 = vadd.f32 %v1228, %v1252
  %v1261 = vlaneseq
  %v1262 = vshrl.u32 %v1261, 7
  %v1263 = vsub.s32 7, %v1262
  %v1264 = vrot.slane %v22, %v1263
  %v1265 = vlaneseq
  %v1266 = vshrl.u32 %v1265, 7
  %v1267 = vsub.s32 7, %v1266
  %v1268 = vrot.slane %v23, %v1267
  %v1269 = vlaneseq
  %v1270 = vshrl.u32 %v1269, 7
  %v1271 = vsub.s32 7, %v1270
  %v1272 = vrot.slane %v24, %v1271
  %v1273 = vmul.f32 %v313, %v1264
  %v1274 = vmul.f32 %v313, %v1268
  %v1275 = vmul.f32 %v313, %v1272
  %1279 = vrot.lane.b32.xlu0 %v1273, 127
  %v1280 = vpop.permute.xlu0 %1279
  %1281 = vrot.lane.b32.xlu0 %v1274, 127
  %v1282 = vpop.permute.xlu0 %1281
  %1283 = vrot.lane.b32.xlu0 %v1275, 127
  %v1284 = vpop.permute.xlu0 %1283
  %v1285 = vsel %vm230, %v1280, %v1282
  %v1286 = vsel %vm230, %v1282, %v1284
  %v1290 = vadd.f32 %v1258, %v1285
  %v1291 = vadd.f32 %v1259, %v1286
  %v1292 = vadd.f32 %v1260, %v1284
  %v1293 = vlaneseq
  %v1294 = vshrl.u32 %v1293, 7
  %v1295 = vsub.s32 4, %v1294
  %v1296 = vrot.slane %v107, %v1295
  %v1297 = vlaneseq
  %v1298 = vshrl.u32 %v1297, 7
  %v1299 = vsub.s32 4, %v1298
  %v1300 = vrot.slane %v108, %v1299
  %v1301 = vlaneseq
  %v1302 = vshrl.u32 %v1301, 7
  %v1303 = vsub.s32 4, %v1302
  %v1304 = vrot.slane %v109, %v1303
  %v1305 = vmul.f32 %v349, %v1296
  %v1306 = vmul.f32 %v349, %v1300
  %v1307 = vmul.f32 %v349, %v1304
  %1311 = vrot.lane.b32.xlu0 %v1305, 126
  %v1312 = vpop.permute.xlu0 %1311
  %1313 = vrot.lane.b32.xlu0 %v1306, 126
  %v1314 = vpop.permute.xlu0 %1313
  %1315 = vrot.lane.b32.xlu0 %v1307, 126
  %v1316 = vpop.permute.xlu0 %1315
  %v1317 = vsel %vm375, %v1312, %v1314
  %v1318 = vsel %vm375, %v1314, %v1316
  %v1322 = vadd.f32 %v1290, %v1317
  %v1323 = vadd.f32 %v1291, %v1318
  %v1324 = vadd.f32 %v1292, %v1316
  %v1325 = vlaneseq
  %v1326 = vshrl.u32 %v1325, 7
  %v1327 = vsub.s32 5, %v1326
  %v1328 = vrot.slane %v107, %v1327
  %v1329 = vlaneseq
  %v1330 = vshrl.u32 %v1329, 7
  %v1331 = vsub.s32 5, %v1330
  %v1332 = vrot.slane %v108, %v1331
  %v1333 = vlaneseq
  %v1334 = vshrl.u32 %v1333, 7
  %v1335 = vsub.s32 5, %v1334
  %v1336 = vrot.slane %v109, %v1335
  %v1337 = vmul.f32 %v386, %v1328
  %v1338 = vmul.f32 %v386, %v1332
  %v1339 = vmul.f32 %v386, %v1336
  %1343 = vrot.lane.b32.xlu0 %v1337, 126
  %v1344 = vpop.permute.xlu0 %1343
  %1345 = vrot.lane.b32.xlu0 %v1338, 126
  %v1346 = vpop.permute.xlu0 %1345
  %1347 = vrot.lane.b32.xlu0 %v1339, 126
  %v1348 = vpop.permute.xlu0 %1347
  %v1349 = vsel %vm375, %v1344, %v1346
  %v1350 = vsel %vm375, %v1346, %v1348
  %v1354 = vadd.f32 %v1322, %v1349
  %v1355 = vadd.f32 %v1323, %v1350
  %v1356 = vadd.f32 %v1324, %v1348
  %v1357 = vlaneseq
  %v1358 = vshrl.u32 %v1357, 7
  %v1359 = vsub.s32 6, %v1358
  %v1360 = vrot.slane %v107, %v1359
  %v1361 = vlaneseq
  %v1362 = vshrl.u32 %v1361, 7
  %v1363 = vsub.s32 6, %v1362
  %v1364 = vrot.slane %v108, %v1363
  %v1365 = vlaneseq
  %v1366 = vshrl.u32 %v1365, 7
  %v1367 = vsub.s32 6, %v1366
  %v1368 = vrot.slane %v109, %v1367
  %v1369 = vmul.f32 %v422, %v1360
  %v1370 = vmul.f32 %v422, %v1364
  %v1371 = vmul.f32 %v422, %v1368
  %1375 = vrot.lane.b32.xlu0 %v1369, 126
  %v1376 = vpop.permute.xlu0 %1375
  %1377 = vrot.lane.b32.xlu0 %v1370, 126
  %v1378 = vpop.permute.xlu0 %1377
  %1379 = vrot.lane.b32.xlu0 %v1371, 126
  %v1380 = vpop.permute.xlu0 %1379
  %v1381 = vsel %vm375, %v1376, %v1378
  %v1382 = vsel %vm375, %v1378, %v1380
  %v1386 = vadd.f32 %v1354, %v1381
  %v1387 = vadd.f32 %v1355, %v1382
  %v1388 = vadd.f32 %v1356, %v1380
  %v1389 = vlaneseq
  %v1390 = vshrl.u32 %v1389, 7
  %v1391 = vsub.s32 7, %v1390
  %v1392 = vrot.slane %v107, %v1391
  %v1393 = vlaneseq
  %v1394 = vshrl.u32 %v1393, 7
  %v1395 = vsub.s32 7, %v1394
  %v1396 = vrot.slane %v108, %v1395
  %v1397 = vlaneseq
  %v1398 = vshrl.u32 %v1397, 7
  %v1399 = vsub.s32 7, %v1398
  %v1400 = vrot.slane %v109, %v1399
  %v1401 = vmul.f32 %v458, %v1392
  %v1402 = vmul.f32 %v458, %v1396
  %v1403 = vmul.f32 %v458, %v1400
  %1407 = vrot.lane.b32.xlu0 %v1401, 126
  %v1408 = vpop.permute.xlu0 %1407
  %1409 = vrot.lane.b32.xlu0 %v1402, 126
  %v1410 = vpop.permute.xlu0 %1409
  %1411 = vrot.lane.b32.xlu0 %v1403, 126
  %v1412 = vpop.permute.xlu0 %1411
  %v1413 = vsel %vm375, %v1408, %v1410
  %v1414 = vsel %vm375, %v1410, %v1412
  %v1418 = vadd.f32 %v1386, %v1413
  %v1419 = vadd.f32 %v1387, %v1414
  %v1420 = vadd.f32 %v1388, %v1412
  %v1421 = vmul.f32 %v494, %v1096
  %v1422 = vmul.f32 %v494, %v1100
  %v1423 = vmul.f32 %v494, %v1104
  %v1424 = vadd.f32 %v1421, 0.0
  %v1425 = vadd.f32 %v1422, 0.0
  %v1426 = vadd.f32 %v1423, 0.0
  %v1427 = vmul.f32 %v504, %v1114
  %v1428 = vmul.f32 %v504, %v1118
  %v1429 = vmul.f32 %v504, %v1122
  %v1430 = vadd.f32 %v1424, %v1427
  %v1431 = vadd.f32 %v1425, %v1428
  %v1432 = vadd.f32 %v1426, %v1429
  %v1433 = vmul.f32 %v514, %v1132
  %v1434 = vmul.f32 %v514, %v1136
  %v1435 = vmul.f32 %v514, %v1140
  %v1436 = vadd.f32 %v1430, %v1433
  %v1437 = vadd.f32 %v1431, %v1434
  %v1438 = vadd.f32 %v1432, %v1435
  %v1439 = vmul.f32 %v524, %v1150
  %v1440 = vmul.f32 %v524, %v1154
  %v1441 = vmul.f32 %v524, %v1158
  %v1442 = vadd.f32 %v1436, %v1439
  %v1443 = vadd.f32 %v1437, %v1440
  %v1444 = vadd.f32 %v1438, %v1441
  %v1445 = vmul.f32 %v534, %v1172
  %v1446 = vmul.f32 %v534, %v1176
  %1449 = vrot.lane.b32.xlu0 %v1445, 127
  %v1450 = vpop.permute.xlu0 %1449
  %1451 = vrot.lane.b32.xlu0 %v1446, 127
  %v1452 = vpop.permute.xlu0 %1451
  %v1453 = vsel %vm230, %v1450, %v1452
  %v1457 = vadd.f32 %v1442, %v1450
  %v1458 = vadd.f32 %v1443, %v1453
  %v1459 = vadd.f32 %v1444, %v1452
  %v1460 = vmul.f32 %v553, %v1204
  %v1461 = vmul.f32 %v553, %v1208
  %1464 = vrot.lane.b32.xlu0 %v1460, 127
  %v1465 = vpop.permute.xlu0 %1464
  %1466 = vrot.lane.b32.xlu0 %v1461, 127
  %v1467 = vpop.permute.xlu0 %1466
  %v1468 = vsel %vm230, %v1465, %v1467
  %v1472 = vadd.f32 %v1457, %v1465
  %v1473 = vadd.f32 %v1458, %v1468
  %v1474 = vadd.f32 %v1459, %v1467
  %v1475 = vmul.f32 %v572, %v1236
  %v1476 = vmul.f32 %v572, %v1240
  %1479 = vrot.lane.b32.xlu0 %v1475, 127
  %v1480 = vpop.permute.xlu0 %1479
  %1481 = vrot.lane.b32.xlu0 %v1476, 127
  %v1482 = vpop.permute.xlu0 %1481
  %v1483 = vsel %vm230, %v1480, %v1482
  %v1487 = vadd.f32 %v1472, %v1480
  %v1488 = vadd.f32 %v1473, %v1483
  %v1489 = vadd.f32 %v1474, %v1482
  %v1490 = vmul.f32 %v591, %v1268
  %v1491 = vmul.f32 %v591, %v1272
  %1494 = vrot.lane.b32.xlu0 %v1490, 127
  %v1495 = vpop.permute.xlu0 %1494
  %1496 = vrot.lane.b32.xlu0 %v1491, 127
  %v1497 = vpop.permute.xlu0 %1496
  %v1498 = vsel %vm230, %v1495, %v1497
  %v1502 = vadd.f32 %v1487, %v1495
  %v1503 = vadd.f32 %v1488, %v1498
  %v1504 = vadd.f32 %v1489, %v1497
  %v1505 = vlaneseq
  %v1506 = vshrl.u32 %v1505, 7
  %v1507 = vsub.s32 4, %v1506
  %v1508 = vrot.slane %v110, %v1507
  %v1509 = vmul.f32 %v610, %v1300
  %v1510 = vmul.f32 %v610, %v1304
  %v1511 = vmul.f32 %v610, %v1508
  %1515 = vrot.lane.b32.xlu0 %v1509, 126
  %v1516 = vpop.permute.xlu0 %1515
  %1517 = vrot.lane.b32.xlu0 %v1510, 126
  %v1518 = vpop.permute.xlu0 %1517
  %1519 = vrot.lane.b32.xlu0 %v1511, 126
  %v1520 = vpop.permute.xlu0 %1519
  %v1521 = vsel %vm375, %v1516, %v1518
  %v1522 = vsel %vm375, %v1518, %v1520
  %v1526 = vadd.f32 %v1502, %v1516
  %v1527 = vadd.f32 %v1503, %v1521
  %v1528 = vadd.f32 %v1504, %v1522
  %v1529 = vlaneseq
  %v1530 = vshrl.u32 %v1529, 7
  %v1531 = vsub.s32 5, %v1530
  %v1532 = vrot.slane %v110, %v1531
  %v1533 = vmul.f32 %v638, %v1332
  %v1534 = vmul.f32 %v638, %v1336
  %v1535 = vmul.f32 %v638, %v1532
  %1539 = vrot.lane.b32.xlu0 %v1533, 126
  %v1540 = vpop.permute.xlu0 %1539
  %1541 = vrot.lane.b32.xlu0 %v1534, 126
  %v1542 = vpop.permute.xlu0 %1541
  %1543 = vrot.lane.b32.xlu0 %v1535, 126
  %v1544 = vpop.permute.xlu0 %1543
  %v1545 = vsel %vm375, %v1540, %v1542
  %v1546 = vsel %vm375, %v1542, %v1544
  %v1550 = vadd.f32 %v1526, %v1540
  %v1551 = vadd.f32 %v1527, %v1545
  %v1552 = vadd.f32 %v1528, %v1546
  %v1553 = vlaneseq
  %v1554 = vshrl.u32 %v1553, 7
  %v1555 = vsub.s32 6, %v1554
  %v1556 = vrot.slane %v110, %v1555
  %v1557 = vmul.f32 %v666, %v1364
  %v1558 = vmul.f32 %v666, %v1368
  %v1559 = vmul.f32 %v666, %v1556
  %1563 = vrot.lane.b32.xlu0 %v1557, 126
  %v1564 = vpop.permute.xlu0 %1563
  %1565 = vrot.lane.b32.xlu0 %v1558, 126
  %v1566 = vpop.permute.xlu0 %1565
  %1567 = vrot.lane.b32.xlu0 %v1559, 126
  %v1568 = vpop.permute.xlu0 %1567
  %v1569 = vsel %vm375, %v1564, %v1566
  %v1570 = vsel %vm375, %v1566, %v1568
  %v1574 = vadd.f32 %v1550, %v1564
  %v1575 = vadd.f32 %v1551, %v1569
  %v1576 = vadd.f32 %v1552, %v1570
  %v1577 = vlaneseq
  %v1578 = vshrl.u32 %v1577, 7
  %v1579 = vsub.s32 7, %v1578
  %v1580 = vrot.slane %v110, %v1579
  %v1581 = vmul.f32 %v694, %v1396
  %v1582 = vmul.f32 %v694, %v1400
  %v1583 = vmul.f32 %v694, %v1580
  %1587 = vrot.lane.b32.xlu0 %v1581, 126
  %v1588 = vpop.permute.xlu0 %1587
  %1589 = vrot.lane.b32.xlu0 %v1582, 126
  %v1590 = vpop.permute.xlu0 %1589
  %1591 = vrot.lane.b32.xlu0 %v1583, 126
  %v1592 = vpop.permute.xlu0 %1591
  %v1593 = vsel %vm375, %v1588, %v1590
  %v1594 = vsel %vm375, %v1590, %v1592
  %v1598 = vadd.f32 %v1574, %v1588
  %v1599 = vadd.f32 %v1575, %v1593
  %v1600 = vadd.f32 %v1576, %v1594
  %v1601 = vlaneseq
  %v1602 = vshrl.u32 %v1601, 7
  %v1603 = vsub.s32 4, %v1602
  %v1604 = vrot.slane %v94, %v1603
  %v1605 = vmul.f32 %v722, %v1100
  %v1606 = vmul.f32 %v722, %v1104
  %v1607 = vmul.f32 %v722, %v1604
  %v1608 = vadd.f32 %v1605, 0.0
  %v1609 = vadd.f32 %v1606, 0.0
  %v1610 = vadd.f32 %v1607, 0.0
  %v1611 = vlaneseq
  %v1612 = vshrl.u32 %v1611, 7
  %v1613 = vsub.s32 5, %v1612
  %v1614 = vrot.slane %v94, %v1613
  %v1615 = vmul.f32 %v736, %v1118
  %v1616 = vmul.f32 %v736, %v1122
  %v1617 = vmul.f32 %v736, %v1614
  %v1618 = vadd.f32 %v1608, %v1615
  %v1619 = vadd.f32 %v1609, %v1616
  %v1620 = vadd.f32 %v1610, %v1617
  %v1621 = vlaneseq
  %v1622 = vshrl.u32 %v1621, 7
  %v1623 = vsub.s32 6, %v1622
  %v1624 = vrot.slane %v94, %v1623
  %v1625 = vmul.f32 %v750, %v1136
  %v1626 = vmul.f32 %v750, %v1140
  %v1627 = vmul.f32 %v750, %v1624
  %v1628 = vadd.f32 %v1618, %v1625
  %v1629 = vadd.f32 %v1619, %v1626
  %v1630 = vadd.f32 %v1620, %v1627
  %v1631 = vlaneseq
  %v1632 = vshrl.u32 %v1631, 7
  %v1633 = vsub.s32 7, %v1632
  %v1634 = vrot.slane %v94, %v1633
  %v1635 = vmul.f32 %v764, %v1154
  %v1636 = vmul.f32 %v764, %v1158
  %v1637 = vmul.f32 %v764, %v1634
  %v1638 = vadd.f32 %v1628, %v1635
  %v1639 = vadd.f32 %v1629, %v1636
  %v1640 = vadd.f32 %v1630, %v1637
  %v1641 = vlaneseq
  %v1642 = vshrl.u32 %v1641, 7
  %v1643 = vsub.s32 4, %v1642
  %v1644 = vrot.slane %v25, %v1643
  %v1645 = vmul.f32 %v778, %v1172
  %v1646 = vmul.f32 %v778, %v1176
  %v1647 = vmul.f32 %v778, %v1644
  %1651 = vrot.lane.b32.xlu0 %v1645, 127
  %v1652 = vpop.permute.xlu0 %1651
  %1653 = vrot.lane.b32.xlu0 %v1646, 127
  %v1654 = vpop.permute.xlu0 %1653
  %1655 = vrot.lane.b32.xlu0 %v1647, 127
  %v1656 = vpop.permute.xlu0 %1655
  %v1657 = vsel %vm230, %v1652, %v1654
  %v1658 = vsel %vm230, %v1654, %v1656
  %v1662 = vadd.f32 %v1638, %v1657
  %v1663 = vadd.f32 %v1639, %v1658
  %v1664 = vadd.f32 %v1640, %v1656
  %v1665 = vlaneseq
  %v1666 = vshrl.u32 %v1665, 7
  %v1667 = vsub.s32 5, %v1666
  %v1668 = vrot.slane %v25, %v1667
  %v1669 = vmul.f32 %v806, %v1204
  %v1670 = vmul.f32 %v806, %v1208
  %v1671 = vmul.f32 %v806, %v1668
  %1675 = vrot.lane.b32.xlu0 %v1669, 127
  %v1676 = vpop.permute.xlu0 %1675
  %1677 = vrot.lane.b32.xlu0 %v1670, 127
  %v1678 = vpop.permute.xlu0 %1677
  %1679 = vrot.lane.b32.xlu0 %v1671, 127
  %v1680 = vpop.permute.xlu0 %1679
  %v1681 = vsel %vm230, %v1676, %v1678
  %v1682 = vsel %vm230, %v1678, %v1680
  %v1686 = vadd.f32 %v1662, %v1681
  %v1687 = vadd.f32 %v1663, %v1682
  %v1688 = vadd.f32 %v1664, %v1680
  %v1689 = vlaneseq
  %v1690 = vshrl.u32 %v1689, 7
  %v1691 = vsub.s32 6, %v1690
  %v1692 = vrot.slane %v25, %v1691
  %v1693 = vmul.f32 %v834, %v1236
  %v1694 = vmul.f32 %v834, %v1240
  %v1695 = vmul.f32 %v834, %v1692
  %1699 = vrot.lane.b32.xlu0 %v1693, 127
  %v1700 = vpop.permute.xlu0 %1699
  %1701 = vrot.lane.b32.xlu0 %v1694, 127
  %v1702 = vpop.permute.xlu0 %1701
  %1703 = vrot.lane.b32.xlu0 %v1695, 127
  %v1704 = vpop.permute.xlu0 %1703
  %v1705 = vsel %vm230, %v1700, %v1702
  %v1706 = vsel %vm230, %v1702, %v1704
  %v1710 = vadd.f32 %v1686, %v1705
  %v1711 = vadd.f32 %v1687, %v1706
  %v1712 = vadd.f32 %v1688, %v1704
  %v1713 = vlaneseq
  %v1714 = vshrl.u32 %v1713, 7
  %v1715 = vsub.s32 7, %v1714
  %v1716 = vrot.slane %v25, %v1715
  %v1717 = vmul.f32 %v862, %v1268
  %v1718 = vmul.f32 %v862, %v1272
  %v1719 = vmul.f32 %v862, %v1716
  %1723 = vrot.lane.b32.xlu0 %v1717, 127
  %v1724 = vpop.permute.xlu0 %1723
  %1725 = vrot.lane.b32.xlu0 %v1718, 127
  %v1726 = vpop.permute.xlu0 %1725
  %1727 = vrot.lane.b32.xlu0 %v1719, 127
  %v1728 = vpop.permute.xlu0 %1727
  %v1729 = vsel %vm230, %v1724, %v1726
  %v1730 = vsel %vm230, %v1726, %v1728
  %v1734 = vadd.f32 %v1710, %v1729
  %v1735 = vadd.f32 %v1711, %v1730
  %v1736 = vadd.f32 %v1712, %v1728
  %v1737 = vmul.f32 %v890, %v1300
  %v1738 = vmul.f32 %v890, %v1304
  %v1739 = vmul.f32 %v890, %v1508
  %1743 = vrot.lane.b32.xlu0 %v1737, 126
  %v1744 = vpop.permute.xlu0 %1743
  %1745 = vrot.lane.b32.xlu0 %v1738, 126
  %v1746 = vpop.permute.xlu0 %1745
  %1747 = vrot.lane.b32.xlu0 %v1739, 126
  %v1748 = vpop.permute.xlu0 %1747
  %v1749 = vsel %vm375, %v1744, %v1746
  %v1750 = vsel %vm375, %v1746, %v1748
  %v1754 = vadd.f32 %v1734, %v1749
  %v1755 = vadd.f32 %v1735, %v1750
  %v1756 = vadd.f32 %v1736, %v1748
  %v1757 = vmul.f32 %v914, %v1332
  %v1758 = vmul.f32 %v914, %v1336
  %v1759 = vmul.f32 %v914, %v1532
  %1763 = vrot.lane.b32.xlu0 %v1757, 126
  %v1764 = vpop.permute.xlu0 %1763
  %1765 = vrot.lane.b32.xlu0 %v1758, 126
  %v1766 = vpop.permute.xlu0 %1765
  %1767 = vrot.lane.b32.xlu0 %v1759, 126
  %v1768 = vpop.permute.xlu0 %1767
  %v1769 = vsel %vm375, %v1764, %v1766
  %v1770 = vsel %vm375, %v1766, %v1768
  %v1774 = vadd.f32 %v1754, %v1769
  %v1775 = vadd.f32 %v1755, %v1770
  %v1776 = vadd.f32 %v1756, %v1768
  %v1777 = vmul.f32 %v938, %v1364
  %v1778 = vmul.f32 %v938, %v1368
  %v1779 = vmul.f32 %v938, %v1556
  %1783 = vrot.lane.b32.xlu0 %v1777, 126
  %v1784 = vpop.permute.xlu0 %1783
  %1785 = vrot.lane.b32.xlu0 %v1778, 126
  %v1786 = vpop.permute.xlu0 %1785
  %1787 = vrot.lane.b32.xlu0 %v1779, 126
  %v1788 = vpop.permute.xlu0 %1787
  %v1789 = vsel %vm375, %v1784, %v1786
  %v1790 = vsel %vm375, %v1786, %v1788
  %v1794 = vadd.f32 %v1774, %v1789
  %v1795 = vadd.f32 %v1775, %v1790
  %v1796 = vadd.f32 %v1776, %v1788
  %v1797 = vmul.f32 %v962, %v1396
  %v1798 = vmul.f32 %v962, %v1400
  %v1799 = vmul.f32 %v962, %v1580
  %1803 = vrot.lane.b32.xlu0 %v1797, 126
  %v1804 = vpop.permute.xlu0 %1803
  %1805 = vrot.lane.b32.xlu0 %v1798, 126
  %v1806 = vpop.permute.xlu0 %1805
  %1807 = vrot.lane.b32.xlu0 %v1799, 126
  %v1808 = vpop.permute.xlu0 %1807
  %v1809 = vsel %vm375, %v1804, %v1806
  %v1810 = vsel %vm375, %v1806, %v1808
  %v1814 = vadd.f32 %v1794, %v1809
  %v1815 = vadd.f32 %v1795, %v1810
  %v1816 = vadd.f32 %v1796, %v1808
  %1820 = vrot.lane.b32.xlu0 %v1598, 112
  %v1821 = vpop.permute.xlu0 %1820
  %1822 = vrot.lane.b32.xlu0 %v1599, 112
  %v1823 = vpop.permute.xlu0 %1822
  %1824 = vrot.lane.b32.xlu0 %v1600, 112
  %v1825 = vpop.permute.xlu0 %1824
  %v1826 = vsel %vm993, %v1821, %v1823
  %v1827 = vsel %vm993, %v1823, %v1825
  %v1831 = vadd.f32 %v1418, %v1826
  %v1832 = vadd.f32 %v1419, %v1827
  %v1833 = vadd.f32 %v1420, %v1825
  %1837 = vrot.lane.b32.xlu0 %v1814, 96
  %v1838 = vpop.permute.xlu0 %1837
  %1839 = vrot.lane.b32.xlu0 %v1815, 96
  %v1840 = vpop.permute.xlu0 %1839
  %1841 = vrot.lane.b32.xlu0 %v1816, 96
  %v1842 = vpop.permute.xlu0 %1841
  %v1843 = vsel %vm1011, %v1838, %v1840
  %v1844 = vsel %vm1011, %v1840, %v1842
  %v1848 = vadd.f32 %v1831, %v1838
  %v1849 = vadd.f32 %v1832, %v1843
  %v1850 = vadd.f32 %v1833, %v1844
  %v1851 = vadd.f32 %v1848, %v1023
  %v1852 = vadd.f32 %v1849, %v1023
  %v1853 = vadd.f32 %v1850, %v1023
  %v1854 = vrot.slane %v23, 4
  %v1855 = vrot.slane %v24, 4
  %1856 = vrot.lane.b32.xlu0 %v1854, 111
  %v1857 = vpop.permute.xlu0 %1856
  %1858 = vrot.lane.b32.xlu0 %v1855, 111
  %v1859 = vpop.permute.xlu0 %1858
  %v1860 = vsel %vm1034, %v1857, %v1859
  %v1864 = vadd.f32 %v1851, %v1857
  %v1865 = vadd.f32 %v1852, %v1860
  %v1866 = vadd.f32 %v1853, %v1859
  %v1870 = vrot.slane %v1864, 4
  %v1871 = vrot.slane %v1865, 4
  %v1872 = vrot.slane %v1866, 4
  %1873 = vrot.lane.b32.xlu0 %v1870, 17
  %v1874 = vpop.permute.xlu0 %1873
  %1875 = vrot.lane.b32.xlu0 %v1871, 17
  %v1876 = vpop.permute.xlu0 %1875
  %1877 = vrot.lane.b32.xlu0 %v1872, 17
  %v1878 = vpop.permute.xlu0 %1877
  %v1879 = vsel %vm1051, %v1874, %v1876
  %v1880 = vsel %vm1051, %v1876, %v1878
  %1883 = vst [vmem:[%s3] sm:$0xf0] %v1879
  %1884 = vst [vmem:[%s3 + $0x8] sm:$0xf0] %v1880
  %1885 = vrot.lane.b32.xlu0 %v1864, 17
  %v1886 = vpop.permute.xlu0 %1885
  %1887 = vrot.lane.b32.xlu0 %v1865, 17
  %v1888 = vpop.permute.xlu0 %1887
  %1889 = vrot.lane.b32.xlu0 %v1866, 17
  %v1890 = vpop.permute.xlu0 %1889
  %v1891 = vsel %vm1051, %v1886, %v1888
  %v1892 = vsel %vm1051, %v1888, %v1890
  %v1895 = vsel %vm1058, %v1891, 0.0
  %v1896 = vsel %vm1058, %v1892, 0.0
  %v1897 = vadd.f32 %v1895, %v1896
  %1898 = vadd.xlane.f32.xlu0 %v1897
  %v1899 = vpop.xlane.xlu0 %1898
  %v1900 = vmul.f32 %v1899, 0.00390625
  %v1901 = vsub.f32 %v1864, %v1900
  %v1902 = vsub.f32 %v1865, %v1900
  %v1903 = vsub.f32 %v1866, %v1900
  %1904 = vst.msk [vmem:[%s4 + $0x4] sm:$0xf] %vm1068, %v1900
  %v1905 = vmul.f32 %v1901, %v1901
  %v1906 = vmul.f32 %v1902, %v1902
  %v1907 = vmul.f32 %v1903, %v1903
  %1911 = vrot.lane.b32.xlu0 %v1905, 17
  %v1912 = vpop.permute.xlu0 %1911
  %1913 = vrot.lane.b32.xlu0 %v1906, 17
  %v1914 = vpop.permute.xlu0 %1913
  %1915 = vrot.lane.b32.xlu0 %v1907, 17
  %v1916 = vpop.permute.xlu0 %1915
  %v1917 = vsel %vm1051, %v1912, %v1914
  %v1918 = vsel %vm1051, %v1914, %v1916
  %v1921 = vsel %vm1058, %v1917, 0.0
  %v1922 = vsel %vm1058, %v1918, 0.0
  %v1923 = vadd.f32 %v1921, %v1922
  %1924 = vadd.xlane.f32.xlu0 %v1923
  %v1925 = vpop.xlane.xlu0 %1924
  %1926 = vst.msk [vmem:[%s4 + $0x4] sm:$0xf] %vm1091, %v1925
  // Predicated region
  $region14: #{resblock_forward.2} parent=0 // pred_check
    _
  $region15: #{resblock_forward.2} parent=0 // pred_check_branch
    %1928 = sbr.rel (0) target = $region17
  $region16: #{resblock_forward.2} parent=0 // pred_region
    _
  $region17: #{resblock_forward.2} parent=0 // pred_fallthru
    _
  // Predicated region
  $region18: #{resblock_forward.2} parent=0 // pred_check
    _
  $region19: #{resblock_forward.2} parent=0 // pred_check_branch
    %1930 = sbr.rel (0) target = $region21
  $region20: #{resblock_forward.2} parent=0 // pred_region
    _
  $region21: #{resblock_forward.2} parent=0 // pred_fallthru
    _
  // Predicated region
  $region22: #{resblock_forward.2} parent=0 // pred_check
    _
  $region23: #{resblock_forward.2} parent=0 // pred_check_branch
    %1932 = sbr.rel (0) target = $region25
  $region24: #{resblock_forward.2} parent=0 // pred_region
    _
  $region25: #{resblock_forward.2} parent=0 // pred_fallthru
    _
  // Predicated region
  $region26: #{resblock_forward.2} parent=0 // pred_check
    _
  $region27: #{resblock_forward.2} parent=0 // pred_check_branch
    %1934 = sbr.rel (0) target = $region29
  $region28: #{resblock_forward.2} parent=0 // pred_region
    _
  $region29: #{resblock_forward.2} parent=0 // pred_fallthru
    _

</llo_original>
